<compile_context>
chip_gen: v7x
topology: tpu7x:2x2x1
jax: 0.10.0
libtpu: 0.0.40
codegen_flags: <defaults>
</compile_context>

<pallas_src>
import math
import functools

import jax
import jax.numpy as jnp
from jax import lax
from jax.experimental import pallas as pl
from jax.experimental.pallas import tpu as pltpu

LN_EPS = 1e-5                      # PyTorch nn.LayerNorm default eps
MATMUL_DTYPE = jnp.bfloat16        # MXU input dtype (accumulation is always f32)


def _layernorm(x, gamma, beta):
    """LayerNorm over the last axis; f32 element-wise math."""
    mu = jnp.mean(x, axis=-1, keepdims=True)
    var = jnp.mean((x - mu) ** 2, axis=-1, keepdims=True)
    return (x - mu) * lax.rsqrt(var + LN_EPS) * gamma + beta


# ---------------------------------------------------------------------------
# Fused Pallas kernel: all SelfAttnBlocks + final LayerNorm (last position only).
# grid = (B // tb, num_blocks)
# ---------------------------------------------------------------------------
def sasrec_fused_kernel(num_heads,
                        x_ref, mask_ref,
                        wqv_ref, wk_ref, wo_ref, w1_ref, w2_ref,
                        vec_ref, fln_ref,
                        out_ref,
                        x_scr):
    l = pl.program_id(1)                       # layer index (sequential axis)
    num_blocks = pl.num_programs(1)

    TB, S, D = x_scr.shape
    Dh = D // num_heads
    scale = 1.0 / math.sqrt(Dh)
    cdt = MATMUL_DTYPE

    # First layer for this batch tile: load the masked input embeddings into the
    # VMEM-resident activation scratch (stays resident across all layers).
    @pl.when(l == 0)
    def _():
        x_scr[...] = x_ref[...]

    x3 = x_scr[...]                            # (TB, S, D) f32

    # Packed per-layer vectors: [bq, bk, bv, bo, b1, b2, ln_g, ln_b]
    vecs = vec_ref[l]                          # (8, D) f32
    bq, bk, bv_, bo = vecs[0], vecs[1], vecs[2], vecs[3]
    b1, b2 = vecs[4], vecs[5]
    g, b = vecs[6], vecs[7]

    # ---- projections over TB*S tokens (large MXU M-dim) -----------------------
    x2 = x3.reshape(TB * S, D)
    xk2 = _layernorm(x2, g, b)                 # key = LayerNorm(x); query = value = x

    qv2 = jnp.dot(x2.astype(cdt), wqv_ref[l],          # fused Q|V: (TB*S, 2D)
                  preferred_element_type=jnp.float32)
    q2 = (qv2[:, :D] + bq) * scale             # fold 1/sqrt(Dh) into Q
    v2 = qv2[:, D:] + bv_
    k2 = jnp.dot(xk2.astype(cdt), wk_ref[l],
                 preferred_element_type=jnp.float32) + bk

    q3 = q2.reshape(TB, S, D).astype(cdt)      # bf16 once; f32 accumulation later
    k3 = k2.reshape(TB, S, D).astype(cdt)
    v3 = v2.reshape(TB, S, D).astype(cdt)

    row = lax.broadcasted_iota(jnp.int32, (S, S), 0)
    col = lax.broadcasted_iota(jnp.int32, (S, S), 1)
    causal = (col <= row)[None]                # (1, S, S); True = attend

    # ---- causal MHA: per-head static unroll, heads concatenated once ----------
    heads = []
    for h in range(num_heads):
        lo, hi = h * Dh, (h + 1) * Dh
        qh = q3[:, :, lo:hi]
        kh = k3[:, :, lo:hi]
        vh = v3[:, :, lo:hi]
        s = jnp.einsum("bqd,bkd->bqk", qh, kh,
                       preferred_element_type=jnp.float32)
        s = jnp.where(causal, s, jnp.float32(-1e30))
        m = jnp.max(s, axis=-1, keepdims=True)
        p = jnp.exp(s - m)                     # f32 softmax math
        p = p * pl.reciprocal(jnp.sum(p, axis=-1, keepdims=True))   # exact
        heads.append(jnp.einsum("bqk,bkd->bqd", p.astype(cdt), vh,
                                preferred_element_type=jnp.float32))
    attn3 = jnp.concatenate(heads, axis=-1)    # (TB, S, D) full-width value

    attn2 = attn3.reshape(TB * S, D).astype(cdt)
    a2 = jnp.dot(attn2, wo_ref[l], preferred_element_type=jnp.float32) + bo

    # TODO(synk): dropout layers are identity (inference); no stochastic masking.
    x_ao2 = x2 + _layernorm(a2, g, b)

    # ---- point-wise FFNN + residual -------------------------------------------
    h1 = jnp.maximum(jnp.dot(x_ao2.astype(cdt), w1_ref[l],
                             preferred_element_type=jnp.float32) + b1, 0.0)
    ff2 = jnp.dot(h1.astype(cdt), w2_ref[l],
                  preferred_element_type=jnp.float32) + b2
    y2 = x_ao2 + _layernorm(ff2, g, b)

    y3 = y2.reshape(TB, S, D) * mask_ref[...]  # (TB, S, 1) mask broadcast over D
    x_scr[...] = y3                            # resident input for the next layer

    # ---- final LayerNorm on the last position only (last layer) ---------------
    @pl.when(l == num_blocks - 1)
    def _():
        last = y3[:, S - 1, :]                                 # (TB, D)
        out_ref[0] = _layernorm(last, fln_ref[0], fln_ref[1])


def _pick_tb(batch, seq_len):
    """Sequences per grid step: largest divisor of `batch` keeping the MXU M-dim
    (tb * seq_len) <= 512 rows.
    TODO(synk): on v7x prefer tb with batch // tb >= 2 so the "parallel" batch axis
    feeds both TensorCores."""
    if seq_len % 8 != 0:
        return 1                   # keep (TB, S, D) <-> (TB*S, D) reshapes trivial
    best = 1
    for tb in range(1, batch + 1):
        if batch % tb == 0 and tb * seq_len <= 512:
            best = tb
    return best


def _vmem_limit_bytes(tb, S, D, L):
    """Scoped-VMEM limit from the actual tile footprint (defaults are 16/32 MiB)."""
    f32b, bf16b = 4, 2
    x_tile = tb * S * D * f32b                        # activation block
    mask_tile = tb * S * 128 * f32b                   # (tb, S, 1) lane-padded in VMEM
    out_tile = tb * max(D, 128) * f32b
    weights = L * 6 * D * D * bf16b                   # wqv(2D^2) + wk/wo/w1/w2(4D^2)
    vecs = (L * 8 * D + 2 * D) * f32b
    scratch = tb * S * D * f32b
    est = 2 * (x_tile + mask_tile + out_tile + weights + vecs) + scratch
    est = 2 * est + (8 << 20)                         # margin for in-body temporaries
    # TODO(synk): for very large (tb, S, D, L) configs re-derive against the chip's
    # physical VMEM (64 MiB on v7x) instead of this clamp.
    return int(max(32 << 20, min(est, 64 << 20)))


# ---------------------------------------------------------------------------
# Full SASRec forward (inference path with item_idxs).
# ---------------------------------------------------------------------------
def sasrec_forward(params, input_seqs, item_idxs, num_heads, tb=None):
    f32 = jnp.float32
    B, S = input_seqs.shape
    D = params["item_emb"].shape[1]
    L = params["wqv"].shape[0]
    assert D % num_heads == 0

    # ---- plain-JAX glue: embeddings + padding mask -----------------------------
    mask = (input_seqs != 0).astype(f32)                        # (B, S) 1 = real item
    x = params["item_emb"][input_seqs] * f32(math.sqrt(D))
    x = x + params["pos_emb"][jnp.arange(S)][None]
    x = x * mask[:, :, None]
    mask3 = mask[:, :, None]                                    # (B, S, 1)

    if tb is None:
        tb = _pick_tb(B, S)
    assert B % tb == 0
    nb = B // tb

    seq_spec = pl.BlockSpec((tb, S, D), lambda i, l: (i, 0, 0))
    mask_spec = pl.BlockSpec((tb, S, 1), lambda i, l: (i, 0, 0))
    # Weights: full-(L, ...) blocks with constant index maps -> VMEM-resident,
    # fetched once for the whole kernel (indexed with [l] inside the body).
    wqv_spec = pl.BlockSpec((L, D, 2 * D), lambda i, l: (0, 0, 0))
    wmat_spec = pl.BlockSpec((L, D, D), lambda i, l: (0, 0, 0))
    vec_spec = pl.BlockSpec((L, 8, D), lambda i, l: (0, 0, 0))
    fln_spec = pl.BlockSpec((2, D), lambda i, l: (0, 0))

    hidden = pl.pallas_call(
        functools.partial(sasrec_fused_kernel, num_heads),
        out_shape=jax.ShapeDtypeStruct((nb, tb, D), f32),
        grid=(nb, L),
        in_specs=[seq_spec, mask_spec,
                  wqv_spec, wmat_spec, wmat_spec, wmat_spec, wmat_spec,
                  vec_spec, fln_spec],
        out_specs=pl.BlockSpec((1, tb, D), lambda i, l: (i, 0, 0)),
        scratch_shapes=[pltpu.VMEM((tb, S, D), f32)],    # resident activations
        compiler_params=pltpu.CompilerParams(
            dimension_semantics=("parallel", "arbitrary"),
            vmem_limit_bytes=_vmem_limit_bytes(tb, S, D, L)),
    )(x, mask3,
      params["wqv"], params["wk"], params["wo"], params["w1"], params["w2"],
      params["vec"], params["fln"])

    hidden = hidden.reshape(B, D)

    # ---- candidate logits OUTSIDE the fused kernel (plain bf16 XLA matvec) -----
    cand = params["item_emb"][item_idxs].astype(MATMUL_DTYPE)   # (B, C, D) unscaled
    return jnp.einsum("bd,bcd->bc", hidden.astype(MATMUL_DTYPE), cand,
                      preferred_element_type=f32)


# ---------------------------------------------------------------------------
# Pure-JAX reference mirroring the kernel math (bf16 matmuls, f32 accumulation,
# f32 LayerNorm / softmax) for correctness checking.
# ---------------------------------------------------------------------------
def sasrec_reference(params, input_seqs, item_idxs, num_heads):
    f32 = jnp.float32
    cdt = MATMUL_DTYPE
    B, S = input_seqs.shape
    D = params["item_emb"].shape[1]
    Dh = D // num_heads
    scale = 1.0 / math.sqrt(Dh)
    L = params["wqv"].shape[0]

    mask3 = (input_seqs != 0).astype(f32)[..., None]
    x = params["item_emb"][input_seqs] * f32(math.sqrt(D))
    x = x + params["pos_emb"][jnp.arange(S)][None]
    x = x * mask3

    causal = (jnp.arange(S)[None, :] <= jnp.arange(S)[:, None])[None]

    def mm(a, w):
        return jnp.einsum("bsd,de->bse", a.astype(cdt), w,
                          preferred_element_type=f32)

    for l in range(L):
        vec = params["vec"][l]
        bq, bk, bv_, bo, b1, b2, g, b_ = (vec[i] for i in range(8))
        xk = _layernorm(x, g, b_)
        qv = mm(x, params["wqv"][l])
        q = ((qv[..., :D] + bq) * scale).astype(cdt)
        v = (qv[..., D:] + bv_).astype(cdt)
        k = (mm(xk, params["wk"][l]) + bk).astype(cdt)
        heads = []
        for h in range(num_heads):
            sl = slice(h * Dh, (h + 1) * Dh)
            s = jnp.einsum("bqd,bkd->bqk", q[..., sl], k[..., sl],
                           preferred_element_type=f32)
            s = jnp.where(causal, s, f32(-1e30))
            m = jnp.max(s, axis=-1, keepdims=True)
            p = jnp.exp(s - m)
            p = p * (1.0 / jnp.sum(p, axis=-1, keepdims=True))
            heads.append(jnp.einsum("bqk,bkd->bqd", p.astype(cdt), v[..., sl],
                                    preferred_element_type=f32))
        attn = jnp.concatenate(heads, axis=-1)
        a = mm(attn, params["wo"][l]) + bo
        x_ao = x + _layernorm(a, g, b_)
        h1 = jnp.maximum(mm(x_ao, params["w1"][l]) + b1, 0.0)
        ff = mm(h1, params["w2"][l]) + b2
        x = (x_ao + _layernorm(ff, g, b_)) * mask3

    xn = _layernorm(x[:, -1, :], params["fln"][0], params["fln"][1])
    cand = params["item_emb"][item_idxs].astype(cdt)
    return jnp.einsum("bd,bcd->bc", xn.astype(cdt), cand,
                      preferred_element_type=f32)


# ---------------------------------------------------------------------------
# Deterministic parameter init (packed layout, bf16 matmul weights).
# ---------------------------------------------------------------------------
def init_params(key, num_items, num_blocks, hidden_dim, max_seq_len):
    D, L = hidden_dim, num_blocks
    k_item, k_pos, k_blk = jax.random.split(key, 3)
    ks = jax.random.split(k_blk, 11)
    wm = lambda k, n: (0.1 * jax.random.normal(k, (L, D, n * D),
                                               jnp.float32)).astype(MATMUL_DTYPE)
    bvec = lambda k: 0.01 * jax.random.normal(k, (L, D), jnp.float32)
    # packed per-layer vectors: [bq, bk, bv, bo, b1, b2, ln_g, ln_b]
    vec = jnp.stack([bvec(ks[5]), bvec(ks[6]), bvec(ks[7]), bvec(ks[8]),
                     bvec(ks[9]), bvec(ks[10]),
                     jnp.ones((L, D), jnp.float32),
                     jnp.zeros((L, D), jnp.float32)], axis=1)   # (L, 8, D)
    fln = jnp.stack([jnp.ones((D,), jnp.float32),
                     jnp.zeros((D,), jnp.float32)], axis=0)     # (2, D) final LN
    return {
        "item_emb": 0.02 * jax.random.normal(k_item, (num_items + 1, D), jnp.float32),
        "pos_emb": 0.02 * jax.random.normal(k_pos, (max_seq_len, D), jnp.float32),
        "wqv": wm(ks[0], 2),                   # fused Q|V projection (L, D, 2D)
        "wk": wm(ks[1], 1), "wo": wm(ks[2], 1),
        "w1": wm(ks[3], 1), "w2": wm(ks[4], 1),
        "vec": vec, "fln": fln,
    }


if __name__ == "__main__":
    # small shapes: batch=4, seq=8, hidden=32, heads=2, blocks=2, 50 items, 10 candidates
    B, S, D, H, NUM_BLOCKS = 4, 8, 32, 2, 2
    NUM_ITEMS, C = 50, 10

    key = jax.random.PRNGKey(0)
    k_par, k_seq, k_cand = jax.random.split(key, 3)

    params = init_params(k_par, NUM_ITEMS, NUM_BLOCKS, D, S)

    input_seqs = jax.random.randint(k_seq, (B, S), 1, NUM_ITEMS + 1, dtype=jnp.int32)
    input_seqs = input_seqs.at[:, :2].set(0)        # left padding (item id 0)
    item_idxs = jax.random.randint(k_cand, (B, C), 1, NUM_ITEMS + 1, dtype=jnp.int32)

    logits = sasrec_forward(params, input_seqs, item_idxs, num_heads=H)
    logits = jax.block_until_ready(logits)

    ref = sasrec_reference(params, input_seqs, item_idxs, num_heads=H)
    ref = jax.block_until_ready(ref)

    assert logits.shape == (B, C)
    assert bool(jnp.all(jnp.isfinite(logits)))
    # tolerance covers MXU-vs-XLA accumulation-order differences of the bf16 matmuls;
    # all other math (f32 LN / softmax, exact reciprocal) is mirrored in the reference.
    assert jnp.allclose(logits, ref, atol=2e-2, rtol=2e-2), (logits, ref)

    print("KERNEL_OK")
</pallas_src>

<mosaic_0001>
module attributes {stable_mosaic.version = 11 : i64} {
  func.func @sasrec_fused_kernel(%arg0: i32, %arg1: i32, %arg2: memref<4x8x32xf32, #tpu.memory_space<vmem>>, %arg3: memref<4x8x1xf32, #tpu.memory_space<vmem>>, %arg4: memref<2x32x64xbf16, #tpu.memory_space<vmem>>, %arg5: memref<2x32x32xbf16, #tpu.memory_space<vmem>>, %arg6: memref<2x32x32xbf16, #tpu.memory_space<vmem>>, %arg7: memref<2x32x32xbf16, #tpu.memory_space<vmem>>, %arg8: memref<2x32x32xbf16, #tpu.memory_space<vmem>>, %arg9: memref<2x8x32xf32, #tpu.memory_space<vmem>>, %arg10: memref<2x32xf32, #tpu.memory_space<vmem>>, %arg11: memref<1x4x32xf32, #tpu.memory_space<vmem>>, %arg12: memref<4x8x32xf32, #tpu.memory_space<vmem>>) attributes {dimension_semantics = [#tpu.dimension_semantics<parallel>, #tpu.dimension_semantics<arbitrary>], iteration_bounds = array<i64: 1, 2>, scalar_prefetch = 0 : i64, scratch_operands = 1 : i64, tpu.core_type = #tpu.core_type<tc>, window_params = [{transform_indices = @transform_0, window_bounds = array<i64: 4, 8, 32>}, {transform_indices = @transform_1, window_bounds = array<i64: 4, 8, 1>}, {pipeline_mode = #tpu.pipeline_mode<synchronous>, transform_indices = @transform_2, window_bounds = array<i64: 2, 32, 64>}, {pipeline_mode = #tpu.pipeline_mode<synchronous>, transform_indices = @transform_3, window_bounds = array<i64: 2, 32, 32>}, {pipeline_mode = #tpu.pipeline_mode<synchronous>, transform_indices = @transform_4, window_bounds = array<i64: 2, 32, 32>}, {pipeline_mode = #tpu.pipeline_mode<synchronous>, transform_indices = @transform_5, window_bounds = array<i64: 2, 32, 32>}, {pipeline_mode = #tpu.pipeline_mode<synchronous>, transform_indices = @transform_6, window_bounds = array<i64: 2, 32, 32>}, {pipeline_mode = #tpu.pipeline_mode<synchronous>, transform_indices = @transform_7, window_bounds = array<i64: 2, 8, 32>}, {pipeline_mode = #tpu.pipeline_mode<synchronous>, transform_indices = @transform_8, window_bounds = array<i64: 2, 32>}, {transform_indices = @transform_9, window_bounds = array<i64: 1, 4, 32>}]} {
    %c0_i32 = arith.constant 0 : i32
    %0 = arith.cmpi eq, %arg1, %c0_i32 : i32
    %1 = arith.extui %0 : i1 to i32
    %c0_i32_0 = arith.constant 0 : i32
    %2 = arith.cmpi ne, %1, %c0_i32_0 : i32
    scf.if %2 {
      %c0_53 = arith.constant 0 : index
      %c0_54 = arith.constant 0 : index
      %c0_55 = arith.constant 0 : index
      %207 = vector.load %arg2[%c0_53, %c0_54, %c0_55] : memref<4x8x32xf32, #tpu.memory_space<vmem>>, vector<4x8x32xf32>
      %c0_56 = arith.constant 0 : index
      %c0_57 = arith.constant 0 : index
      %c0_58 = arith.constant 0 : index
      %208 = vector.load %arg12[%c0_56, %c0_57, %c0_58] : memref<4x8x32xf32, #tpu.memory_space<vmem>>, vector<4x8x32xf32>
      tpu.vector_store %arg12[%c0_56, %c0_57, %c0_58], %207 {strides = array<i32>} : memref<4x8x32xf32, #tpu.memory_space<vmem>>, vector<4x8x32xf32>,
    } else {
    }
    %c0 = arith.constant 0 : index
    %c0_1 = arith.constant 0 : index
    %c0_2 = arith.constant 0 : index
    %3 = vector.load %arg12[%c0, %c0_1, %c0_2] : memref<4x8x32xf32, #tpu.memory_space<vmem>>, vector<4x8x32xf32>
    %4 = arith.index_cast %arg1 : i32 to index
    %c0_3 = arith.constant 0 : index
    %c0_4 = arith.constant 0 : index
    %5 = vector.load %arg9[%4, %c0_3, %c0_4] : memref<2x8x32xf32, #tpu.memory_space<vmem>>, vector<1x8x32xf32>
    %6 = vector.shape_cast %5 : vector<1x8x32xf32> to vector<8x32xf32>
    %7 = vector.extract_strided_slice %6 {offsets = [0, 0], sizes = [1, 32], strides = [1, 1]} : vector<8x32xf32> to vector<1x32xf32>
    %8 = vector.shape_cast %7 : vector<1x32xf32> to vector<32xf32>
    %9 = vector.extract_strided_slice %6 {offsets = [1, 0], sizes = [1, 32], strides = [1, 1]} : vector<8x32xf32> to vector<1x32xf32>
    %10 = vector.shape_cast %9 : vector<1x32xf32> to vector<32xf32>
    %11 = vector.extract_strided_slice %6 {offsets = [2, 0], sizes = [1, 32], strides = [1, 1]} : vector<8x32xf32> to vector<1x32xf32>
    %12 = vector.shape_cast %11 : vector<1x32xf32> to vector<32xf32>
    %13 = vector.extract_strided_slice %6 {offsets = [3, 0], sizes = [1, 32], strides = [1, 1]} : vector<8x32xf32> to vector<1x32xf32>
    %14 = vector.shape_cast %13 : vector<1x32xf32> to vector<32xf32>
    %15 = vector.extract_strided_slice %6 {offsets = [4, 0], sizes = [1, 32], strides = [1, 1]} : vector<8x32xf32> to vector<1x32xf32>
    %16 = vector.shape_cast %15 : vector<1x32xf32> to vector<32xf32>
    %17 = vector.extract_strided_slice %6 {offsets = [5, 0], sizes = [1, 32], strides = [1, 1]} : vector<8x32xf32> to vector<1x32xf32>
    %18 = vector.shape_cast %17 : vector<1x32xf32> to vector<32xf32>
    %19 = vector.extract_strided_slice %6 {offsets = [6, 0], sizes = [1, 32], strides = [1, 1]} : vector<8x32xf32> to vector<1x32xf32>
    %20 = vector.shape_cast %19 : vector<1x32xf32> to vector<32xf32>
    %21 = vector.extract_strided_slice %6 {offsets = [7, 0], sizes = [1, 32], strides = [1, 1]} : vector<8x32xf32> to vector<1x32xf32>
    %22 = vector.shape_cast %21 : vector<1x32xf32> to vector<32xf32>
    %23 = vector.shape_cast %3 : vector<4x8x32xf32> to vector<32x32xf32>
    %cst = arith.constant dense<0.000000e+00> : vector<32xf32>
    %24 = vector.multi_reduction <add>, %23, %cst [1] : vector<32x32xf32> to vector<32xf32>
    %25 = vector.shape_cast %24 : vector<32xf32> to vector<32x1xf32>
    %cst_5 = arith.constant 3.200000e+01 : f32
    %26 = vector.broadcast %cst_5 : f32 to vector<32x1xf32>
    %27 = arith.divf %25, %26 : vector<32x1xf32>
    %28 = vector.broadcast %27 : vector<32x1xf32> to vector<32x32xf32>
    %29 = arith.subf %23, %28 : vector<32x32xf32>
    %30 = arith.mulf %29, %29 : vector<32x32xf32>
    %cst_6 = arith.constant dense<0.000000e+00> : vector<32xf32>
    %31 = vector.multi_reduction <add>, %30, %cst_6 [1] : vector<32x32xf32> to vector<32xf32>
    %32 = vector.shape_cast %31 : vector<32xf32> to vector<32x1xf32>
    %cst_7 = arith.constant 3.200000e+01 : f32
    %33 = vector.broadcast %cst_7 : f32 to vector<32x1xf32>
    %34 = arith.divf %32, %33 : vector<32x1xf32>
    %35 = vector.broadcast %27 : vector<32x1xf32> to vector<32x32xf32>
    %36 = arith.subf %23, %35 : vector<32x32xf32>
    %cst_8 = arith.constant 9.99999974E-6 : f32
    %37 = vector.broadcast %cst_8 : f32 to vector<32x1xf32>
    %38 = arith.addf %34, %37 : vector<32x1xf32>
    %39 = math.rsqrt %38 : vector<32x1xf32>
    %40 = vector.broadcast %39 : vector<32x1xf32> to vector<32x32xf32>
    %41 = arith.mulf %36, %40 : vector<32x32xf32>
    %42 = vector.shape_cast %20 : vector<32xf32> to vector<1x32xf32>
    %43 = vector.broadcast %42 : vector<1x32xf32> to vector<32x32xf32>
    %44 = arith.mulf %41, %43 : vector<32x32xf32>
    %45 = vector.shape_cast %22 : vector<32xf32> to vector<1x32xf32>
    %46 = vector.broadcast %45 : vector<1x32xf32> to vector<32x32xf32>
    %47 = arith.addf %44, %46 : vector<32x32xf32>
    %48 = arith.truncf %23 : vector<32x32xf32> to vector<32x32xbf16>
    %49 = arith.index_cast %arg1 : i32 to index
    %c0_9 = arith.constant 0 : index
    %c0_10 = arith.constant 0 : index
    %50 = vector.load %arg4[%49, %c0_9, %c0_10] : memref<2x32x64xbf16, #tpu.memory_space<vmem>>, vector<1x32x64xbf16>
    %51 = vector.shape_cast %50 : vector<1x32x64xbf16> to vector<32x64xbf16>
    %cst_11 = arith.constant dense<0.000000e+00> : vector<32x64xf32>
    %52 = tpu.matmul %48, %51, %cst_11 {dimension_numbers = #tpu.dot_dimension_numbers<[1], [0], [0], [1], [0, 0, 1, 1], [], []>} : vector<32x32xbf16>, vector<32x64xbf16>, vector<32x64xf32> -> vector<32x64xf32>
    %53 = vector.extract_strided_slice %52 {offsets = [0, 0], sizes = [32, 32], strides = [1, 1]} : vector<32x64xf32> to vector<32x32xf32>
    %54 = vector.shape_cast %8 : vector<32xf32> to vector<1x32xf32>
    %55 = vector.broadcast %54 : vector<1x32xf32> to vector<32x32xf32>
    %56 = arith.addf %53, %55 : vector<32x32xf32>
    %cst_12 = arith.constant 2.500000e-01 : f32
    %57 = vector.broadcast %cst_12 : f32 to vector<32x32xf32>
    %58 = arith.mulf %56, %57 : vector<32x32xf32>
    %59 = vector.extract_strided_slice %52 {offsets = [0, 32], sizes = [32, 32], strides = [1, 1]} : vector<32x64xf32> to vector<32x32xf32>
    %60 = vector.shape_cast %12 : vector<32xf32> to vector<1x32xf32>
    %61 = vector.broadcast %60 : vector<1x32xf32> to vector<32x32xf32>
    %62 = arith.addf %59, %61 : vector<32x32xf32>
    %63 = arith.truncf %47 : vector<32x32xf32> to vector<32x32xbf16>
    %64 = arith.index_cast %arg1 : i32 to index
    %c0_13 = arith.constant 0 : index
    %c0_14 = arith.constant 0 : index
    %65 = vector.load %arg5[%64, %c0_13, %c0_14] : memref<2x32x32xbf16, #tpu.memory_space<vmem>>, vector<1x32x32xbf16>
    %66 = vector.shape_cast %65 : vector<1x32x32xbf16> to vector<32x32xbf16>
    %cst_15 = arith.constant dense<0.000000e+00> : vector<32x32xf32>
    %67 = tpu.matmul %63, %66, %cst_15 {dimension_numbers = #tpu.dot_dimension_numbers<[1], [0], [0], [1], [0, 0, 1, 1], [], []>} : vector<32x32xbf16>, vector<32x32xbf16>, vector<32x32xf32> -> vector<32x32xf32>
    %68 = vector.shape_cast %10 : vector<32xf32> to vector<1x32xf32>
    %69 = vector.broadcast %68 : vector<1x32xf32> to vector<32x32xf32>
    %70 = arith.addf %67, %69 : vector<32x32xf32>
    %71 = vector.shape_cast %58 : vector<32x32xf32> to vector<4x8x32xf32>
    %72 = arith.truncf %71 : vector<4x8x32xf32> to vector<4x8x32xbf16>
    %73 = vector.shape_cast %70 : vector<32x32xf32> to vector<4x8x32xf32>
    %74 = arith.truncf %73 : vector<4x8x32xf32> to vector<4x8x32xbf16>
    %75 = vector.shape_cast %62 : vector<32x32xf32> to vector<4x8x32xf32>
    %76 = arith.truncf %75 : vector<4x8x32xf32> to vector<4x8x32xbf16>
    %77 = tpu.iota {dimensions = array<i32: 0>} : vector<8x8xi32>
    %78 = tpu.iota {dimensions = array<i32: 1>} : vector<8x8xi32>
    %79 = arith.cmpi sle, %78, %77 : vector<8x8xi32>
    %80 = vector.shape_cast %79 : vector<8x8xi1> to vector<1x8x8xi1>
    %81 = vector.extract_strided_slice %72 {offsets = [0, 0, 0], sizes = [4, 8, 16], strides = [1, 1, 1]} : vector<4x8x32xbf16> to vector<4x8x16xbf16>
    %82 = vector.extract_strided_slice %74 {offsets = [0, 0, 0], sizes = [4, 8, 16], strides = [1, 1, 1]} : vector<4x8x32xbf16> to vector<4x8x16xbf16>
    %83 = vector.extract_strided_slice %76 {offsets = [0, 0, 0], sizes = [4, 8, 16], strides = [1, 1, 1]} : vector<4x8x32xbf16> to vector<4x8x16xbf16>
    "tpu.trace_start"() <{level = 10 : i32, message = "bqd,bkd->bqk"}> : () -> ()
    %cst_16 = arith.constant dense<0.000000e+00> : vector<4x8x8xf32>
    %84 = tpu.matmul %81, %82, %cst_16 {dimension_numbers = #tpu.dot_dimension_numbers<[2], [2], [1], [1], [0, 0, 0, 1, 1, 1], [0], [0]>} : vector<4x8x16xbf16>, vector<4x8x16xbf16>, vector<4x8x8xf32> -> vector<4x8x8xf32>
    %cst_17 = arith.constant -1.000000e+30 : f32
    "tpu.trace_stop"() : () -> ()
    %85 = vector.shape_cast %80 : vector<1x8x8xi1> to vector<1x8x8xi1>
    %86 = vector.broadcast %85 : vector<1x8x8xi1> to vector<4x8x8xi1>
    %87 = vector.broadcast %cst_17 : f32 to vector<4x8x8xf32>
    %88 = arith.select %86, %84, %87 : vector<4x8x8xi1>, vector<4x8x8xf32>
    %cst_18 = arith.constant dense<0xFF800000> : vector<4x8xf32>
    %89 = vector.multi_reduction <maximumf>, %88, %cst_18 [2] : vector<4x8x8xf32> to vector<4x8xf32>
    %90 = vector.shape_cast %89 : vector<4x8xf32> to vector<4x8x1xf32>
    %91 = vector.broadcast %90 : vector<4x8x1xf32> to vector<4x8x8xf32>
    %92 = arith.subf %88, %91 : vector<4x8x8xf32>
    %93 = math.exp %92 : vector<4x8x8xf32>
    %cst_19 = arith.constant dense<0.000000e+00> : vector<4x8xf32>
    %94 = vector.multi_reduction <add>, %93, %cst_19 [2] : vector<4x8x8xf32> to vector<4x8xf32>
    %95 = vector.shape_cast %94 : vector<4x8xf32> to vector<4x8x1xf32>
    %96 = tpu.reciprocal %95 : vector<4x8x1xf32> -> vector<4x8x1xf32>
    %97 = vector.broadcast %96 : vector<4x8x1xf32> to vector<4x8x8xf32>
    %98 = arith.mulf %93, %97 : vector<4x8x8xf32>
    %99 = arith.truncf %98 : vector<4x8x8xf32> to vector<4x8x8xbf16>
    "tpu.trace_start"() <{level = 10 : i32, message = "bqk,bkd->bqd"}> : () -> ()
    %cst_20 = arith.constant dense<0.000000e+00> : vector<4x8x16xf32>
    %100 = tpu.matmul %99, %83, %cst_20 {dimension_numbers = #tpu.dot_dimension_numbers<[2], [1], [1], [2], [0, 0, 0, 1, 1, 2], [0], [0]>} : vector<4x8x8xbf16>, vector<4x8x16xbf16>, vector<4x8x16xf32> -> vector<4x8x16xf32>
    "tpu.trace_stop"() : () -> ()
    %101 = vector.extract_strided_slice %72 {offsets = [0, 0, 16], sizes = [4, 8, 16], strides = [1, 1, 1]} : vector<4x8x32xbf16> to vector<4x8x16xbf16>
    %102 = vector.extract_strided_slice %74 {offsets = [0, 0, 16], sizes = [4, 8, 16], strides = [1, 1, 1]} : vector<4x8x32xbf16> to vector<4x8x16xbf16>
    %103 = vector.extract_strided_slice %76 {offsets = [0, 0, 16], sizes = [4, 8, 16], strides = [1, 1, 1]} : vector<4x8x32xbf16> to vector<4x8x16xbf16>
    "tpu.trace_start"() <{level = 10 : i32, message = "bqd,bkd->bqk"}> : () -> ()
    %cst_21 = arith.constant dense<0.000000e+00> : vector<4x8x8xf32>
    %104 = tpu.matmul %101, %102, %cst_21 {dimension_numbers = #tpu.dot_dimension_numbers<[2], [2], [1], [1], [0, 0, 0, 1, 1, 1], [0], [0]>} : vector<4x8x16xbf16>, vector<4x8x16xbf16>, vector<4x8x8xf32> -> vector<4x8x8xf32>
    %cst_22 = arith.constant -1.000000e+30 : f32
    "tpu.trace_stop"() : () -> ()
    %105 = vector.shape_cast %80 : vector<1x8x8xi1> to vector<1x8x8xi1>
    %106 = vector.broadcast %105 : vector<1x8x8xi1> to vector<4x8x8xi1>
    %107 = vector.broadcast %cst_22 : f32 to vector<4x8x8xf32>
    %108 = arith.select %106, %104, %107 : vector<4x8x8xi1>, vector<4x8x8xf32>
    %cst_23 = arith.constant dense<0xFF800000> : vector<4x8xf32>
    %109 = vector.multi_reduction <maximumf>, %108, %cst_23 [2] : vector<4x8x8xf32> to vector<4x8xf32>
    %110 = vector.shape_cast %109 : vector<4x8xf32> to vector<4x8x1xf32>
    %111 = vector.broadcast %110 : vector<4x8x1xf32> to vector<4x8x8xf32>
    %112 = arith.subf %108, %111 : vector<4x8x8xf32>
    %113 = math.exp %112 : vector<4x8x8xf32>
    %cst_24 = arith.constant dense<0.000000e+00> : vector<4x8xf32>
    %114 = vector.multi_reduction <add>, %113, %cst_24 [2] : vector<4x8x8xf32> to vector<4x8xf32>
    %115 = vector.shape_cast %114 : vector<4x8xf32> to vector<4x8x1xf32>
    %116 = tpu.reciprocal %115 : vector<4x8x1xf32> -> vector<4x8x1xf32>
    %117 = vector.broadcast %116 : vector<4x8x1xf32> to vector<4x8x8xf32>
    %118 = arith.mulf %113, %117 : vector<4x8x8xf32>
    %119 = arith.truncf %118 : vector<4x8x8xf32> to vector<4x8x8xbf16>
    "tpu.trace_start"() <{level = 10 : i32, message = "bqk,bkd->bqd"}> : () -> ()
    %cst_25 = arith.constant dense<0.000000e+00> : vector<4x8x16xf32>
    %120 = tpu.matmul %119, %103, %cst_25 {dimension_numbers = #tpu.dot_dimension_numbers<[2], [1], [1], [2], [0, 0, 0, 1, 1, 2], [0], [0]>} : vector<4x8x8xbf16>, vector<4x8x16xbf16>, vector<4x8x16xf32> -> vector<4x8x16xf32>
    "tpu.trace_stop"() : () -> ()
    %121 = tpu.concatenate %100, %120 in 2 : vector<4x8x16xf32>, vector<4x8x16xf32> -> vector<4x8x32xf32>
    %122 = vector.shape_cast %121 : vector<4x8x32xf32> to vector<32x32xf32>
    %123 = arith.truncf %122 : vector<32x32xf32> to vector<32x32xbf16>
    %124 = arith.index_cast %arg1 : i32 to index
    %c0_26 = arith.constant 0 : index
    %c0_27 = arith.constant 0 : index
    %125 = vector.load %arg6[%124, %c0_26, %c0_27] : memref<2x32x32xbf16, #tpu.memory_space<vmem>>, vector<1x32x32xbf16>
    %126 = vector.shape_cast %125 : vector<1x32x32xbf16> to vector<32x32xbf16>
    %cst_28 = arith.constant dense<0.000000e+00> : vector<32x32xf32>
    %127 = tpu.matmul %123, %126, %cst_28 {dimension_numbers = #tpu.dot_dimension_numbers<[1], [0], [0], [1], [0, 0, 1, 1], [], []>} : vector<32x32xbf16>, vector<32x32xbf16>, vector<32x32xf32> -> vector<32x32xf32>
    %128 = vector.shape_cast %14 : vector<32xf32> to vector<1x32xf32>
    %129 = vector.broadcast %128 : vector<1x32xf32> to vector<32x32xf32>
    %130 = arith.addf %127, %129 : vector<32x32xf32>
    %cst_29 = arith.constant dense<0.000000e+00> : vector<32xf32>
    %131 = vector.multi_reduction <add>, %130, %cst_29 [1] : vector<32x32xf32> to vector<32xf32>
    %132 = vector.shape_cast %131 : vector<32xf32> to vector<32x1xf32>
    %cst_30 = arith.constant 3.200000e+01 : f32
    %133 = vector.broadcast %cst_30 : f32 to vector<32x1xf32>
    %134 = arith.divf %132, %133 : vector<32x1xf32>
    %135 = vector.broadcast %134 : vector<32x1xf32> to vector<32x32xf32>
    %136 = arith.subf %130, %135 : vector<32x32xf32>
    %137 = arith.mulf %136, %136 : vector<32x32xf32>
    %cst_31 = arith.constant dense<0.000000e+00> : vector<32xf32>
    %138 = vector.multi_reduction <add>, %137, %cst_31 [1] : vector<32x32xf32> to vector<32xf32>
    %139 = vector.shape_cast %138 : vector<32xf32> to vector<32x1xf32>
    %cst_32 = arith.constant 3.200000e+01 : f32
    %140 = vector.broadcast %cst_32 : f32 to vector<32x1xf32>
    %141 = arith.divf %139, %140 : vector<32x1xf32>
    %142 = vector.broadcast %134 : vector<32x1xf32> to vector<32x32xf32>
    %143 = arith.subf %130, %142 : vector<32x32xf32>
    %cst_33 = arith.constant 9.99999974E-6 : f32
    %144 = vector.broadcast %cst_33 : f32 to vector<32x1xf32>
    %145 = arith.addf %141, %144 : vector<32x1xf32>
    %146 = math.rsqrt %145 : vector<32x1xf32>
    %147 = vector.broadcast %146 : vector<32x1xf32> to vector<32x32xf32>
    %148 = arith.mulf %143, %147 : vector<32x32xf32>
    %149 = vector.shape_cast %20 : vector<32xf32> to vector<1x32xf32>
    %150 = vector.broadcast %149 : vector<1x32xf32> to vector<32x32xf32>
    %151 = arith.mulf %148, %150 : vector<32x32xf32>
    %152 = vector.shape_cast %22 : vector<32xf32> to vector<1x32xf32>
    %153 = vector.broadcast %152 : vector<1x32xf32> to vector<32x32xf32>
    %154 = arith.addf %151, %153 : vector<32x32xf32>
    %155 = arith.addf %23, %154 : vector<32x32xf32>
    %156 = arith.truncf %155 : vector<32x32xf32> to vector<32x32xbf16>
    %157 = arith.index_cast %arg1 : i32 to index
    %c0_34 = arith.constant 0 : index
    %c0_35 = arith.constant 0 : index
    %158 = vector.load %arg7[%157, %c0_34, %c0_35] : memref<2x32x32xbf16, #tpu.memory_space<vmem>>, vector<1x32x32xbf16>
    %159 = vector.shape_cast %158 : vector<1x32x32xbf16> to vector<32x32xbf16>
    %cst_36 = arith.constant dense<0.000000e+00> : vector<32x32xf32>
    %160 = tpu.matmul %156, %159, %cst_36 {dimension_numbers = #tpu.dot_dimension_numbers<[1], [0], [0], [1], [0, 0, 1, 1], [], []>} : vector<32x32xbf16>, vector<32x32xbf16>, vector<32x32xf32> -> vector<32x32xf32>
    %161 = vector.shape_cast %16 : vector<32xf32> to vector<1x32xf32>
    %162 = vector.broadcast %161 : vector<1x32xf32> to vector<32x32xf32>
    %163 = arith.addf %160, %162 : vector<32x32xf32>
    %cst_37 = arith.constant 0.000000e+00 : f32
    %164 = vector.broadcast %cst_37 : f32 to vector<32x32xf32>
    %165 = arith.maximumf %163, %164 : vector<32x32xf32>
    %166 = arith.truncf %165 : vector<32x32xf32> to vector<32x32xbf16>
    %167 = arith.index_cast %arg1 : i32 to index
    %c0_38 = arith.constant 0 : index
    %c0_39 = arith.constant 0 : index
    %168 = vector.load %arg8[%167, %c0_38, %c0_39] : memref<2x32x32xbf16, #tpu.memory_space<vmem>>, vector<1x32x32xbf16>
    %169 = vector.shape_cast %168 : vector<1x32x32xbf16> to vector<32x32xbf16>
    %cst_40 = arith.constant dense<0.000000e+00> : vector<32x32xf32>
    %170 = tpu.matmul %166, %169, %cst_40 {dimension_numbers = #tpu.dot_dimension_numbers<[1], [0], [0], [1], [0, 0, 1, 1], [], []>} : vector<32x32xbf16>, vector<32x32xbf16>, vector<32x32xf32> -> vector<32x32xf32>
    %171 = vector.shape_cast %18 : vector<32xf32> to vector<1x32xf32>
    %172 = vector.broadcast %171 : vector<1x32xf32> to vector<32x32xf32>
    %173 = arith.addf %170, %172 : vector<32x32xf32>
    %cst_41 = arith.constant dense<0.000000e+00> : vector<32xf32>
    %174 = vector.multi_reduction <add>, %173, %cst_41 [1] : vector<32x32xf32> to vector<32xf32>
    %175 = vector.shape_cast %174 : vector<32xf32> to vector<32x1xf32>
    %cst_42 = arith.constant 3.200000e+01 : f32
    %176 = vector.broadcast %cst_42 : f32 to vector<32x1xf32>
    %177 = arith.divf %175, %176 : vector<32x1xf32>
    %178 = vector.broadcast %177 : vector<32x1xf32> to vector<32x32xf32>
    %179 = arith.subf %173, %178 : vector<32x32xf32>
    %180 = arith.mulf %179, %179 : vector<32x32xf32>
    %cst_43 = arith.constant dense<0.000000e+00> : vector<32xf32>
    %181 = vector.multi_reduction <add>, %180, %cst_43 [1] : vector<32x32xf32> to vector<32xf32>
    %182 = vector.shape_cast %181 : vector<32xf32> to vector<32x1xf32>
    %cst_44 = arith.constant 3.200000e+01 : f32
    %183 = vector.broadcast %cst_44 : f32 to vector<32x1xf32>
    %184 = arith.divf %182, %183 : vector<32x1xf32>
    %185 = vector.broadcast %177 : vector<32x1xf32> to vector<32x32xf32>
    %186 = arith.subf %173, %185 : vector<32x32xf32>
    %cst_45 = arith.constant 9.99999974E-6 : f32
    %187 = vector.broadcast %cst_45 : f32 to vector<32x1xf32>
    %188 = arith.addf %184, %187 : vector<32x1xf32>
    %189 = math.rsqrt %188 : vector<32x1xf32>
    %190 = vector.broadcast %189 : vector<32x1xf32> to vector<32x32xf32>
    %191 = arith.mulf %186, %190 : vector<32x32xf32>
    %192 = vector.shape_cast %20 : vector<32xf32> to vector<1x32xf32>
    %193 = vector.broadcast %192 : vector<1x32xf32> to vector<32x32xf32>
    %194 = arith.mulf %191, %193 : vector<32x32xf32>
    %195 = vector.shape_cast %22 : vector<32xf32> to vector<1x32xf32>
    %196 = vector.broadcast %195 : vector<1x32xf32> to vector<32x32xf32>
    %197 = arith.addf %194, %196 : vector<32x32xf32>
    %198 = arith.addf %155, %197 : vector<32x32xf32>
    %199 = vector.shape_cast %198 : vector<32x32xf32> to vector<4x8x32xf32>
    %c0_46 = arith.constant 0 : index
    %c0_47 = arith.constant 0 : index
    %c0_48 = arith.constant 0 : index
    %200 = vector.load %arg3[%c0_46, %c0_47, %c0_48] : memref<4x8x1xf32, #tpu.memory_space<vmem>>, vector<4x8x1xf32>
    %201 = vector.broadcast %200 : vector<4x8x1xf32> to vector<4x8x32xf32>
    %202 = arith.mulf %199, %201 : vector<4x8x32xf32>
    %c0_49 = arith.constant 0 : index
    %c0_50 = arith.constant 0 : index
    %c0_51 = arith.constant 0 : index
    %203 = vector.load %arg12[%c0_49, %c0_50, %c0_51] : memref<4x8x32xf32, #tpu.memory_space<vmem>>, vector<4x8x32xf32>
    tpu.vector_store %arg12[%c0_49, %c0_50, %c0_51], %202 {strides = array<i32>} : memref<4x8x32xf32, #tpu.memory_space<vmem>>, vector<4x8x32xf32>,
    %c1_i32 = arith.constant 1 : i32
    %204 = arith.cmpi eq, %arg1, %c1_i32 : i32
    %205 = arith.extui %204 : i1 to i32
    %c0_i32_52 = arith.constant 0 : i32
    %206 = arith.cmpi ne, %205, %c0_i32_52 : i32
    scf.if %206 {
      %207 = vector.extract_strided_slice %202 {offsets = [0, 7, 0], sizes = [4, 1, 32], strides = [1, 1, 1]} : vector<4x8x32xf32> to vector<4x1x32xf32>
      %208 = vector.shape_cast %207 : vector<4x1x32xf32> to vector<4x32xf32>
      %c0_53 = arith.constant 0 : index
      %c0_54 = arith.constant 0 : index
      %209 = vector.load %arg10[%c0_53, %c0_54] : memref<2x32xf32, #tpu.memory_space<vmem>>, vector<1x32xf32>
      %210 = vector.shape_cast %209 : vector<1x32xf32> to vector<32xf32>
      %c1 = arith.constant 1 : index
      %c0_55 = arith.constant 0 : index
      %211 = vector.load %arg10[%c1, %c0_55] : memref<2x32xf32, #tpu.memory_space<vmem>>, vector<1x32xf32>
      %212 = vector.shape_cast %211 : vector<1x32xf32> to vector<32xf32>
      %cst_56 = arith.constant dense<0.000000e+00> : vector<4xf32>
      %213 = vector.multi_reduction <add>, %208, %cst_56 [1] : vector<4x32xf32> to vector<4xf32>
      %214 = vector.shape_cast %213 : vector<4xf32> to vector<4x1xf32>
      %cst_57 = arith.constant 3.200000e+01 : f32
      %215 = vector.broadcast %cst_57 : f32 to vector<4x1xf32>
      %216 = arith.divf %214, %215 : vector<4x1xf32>
      %217 = vector.broadcast %216 : vector<4x1xf32> to vector<4x32xf32>
      %218 = arith.subf %208, %217 : vector<4x32xf32>
      %219 = arith.mulf %218, %218 : vector<4x32xf32>
      %cst_58 = arith.constant dense<0.000000e+00> : vector<4xf32>
      %220 = vector.multi_reduction <add>, %219, %cst_58 [1] : vector<4x32xf32> to vector<4xf32>
      %221 = vector.shape_cast %220 : vector<4xf32> to vector<4x1xf32>
      %cst_59 = arith.constant 3.200000e+01 : f32
      %222 = vector.broadcast %cst_59 : f32 to vector<4x1xf32>
      %223 = arith.divf %221, %222 : vector<4x1xf32>
      %224 = vector.broadcast %216 : vector<4x1xf32> to vector<4x32xf32>
      %225 = arith.subf %208, %224 : vector<4x32xf32>
      %cst_60 = arith.constant 9.99999974E-6 : f32
      %226 = vector.broadcast %cst_60 : f32 to vector<4x1xf32>
      %227 = arith.addf %223, %226 : vector<4x1xf32>
      %228 = math.rsqrt %227 : vector<4x1xf32>
      %229 = vector.broadcast %228 : vector<4x1xf32> to vector<4x32xf32>
      %230 = arith.mulf %225, %229 : vector<4x32xf32>
      %231 = vector.shape_cast %210 : vector<32xf32> to vector<1x32xf32>
      %232 = vector.broadcast %231 : vector<1x32xf32> to vector<4x32xf32>
      %233 = arith.mulf %230, %232 : vector<4x32xf32>
      %234 = vector.shape_cast %212 : vector<32xf32> to vector<1x32xf32>
      %235 = vector.broadcast %234 : vector<1x32xf32> to vector<4x32xf32>
      %236 = arith.addf %233, %235 : vector<4x32xf32>
      %c0_61 = arith.constant 0 : index
      %c0_62 = arith.constant 0 : index
      %c0_63 = arith.constant 0 : index
      %237 = vector.load %arg11[%c0_61, %c0_62, %c0_63] : memref<1x4x32xf32, #tpu.memory_space<vmem>>, vector<1x4x32xf32>
      %238 = vector.shape_cast %237 : vector<1x4x32xf32> to vector<4x32xf32>
      %239 = vector.shape_cast %236 : vector<4x32xf32> to vector<1x4x32xf32>
      tpu.vector_store %arg11[%c0_61, %c0_62, %c0_63], %239 {strides = array<i32>} : memref<1x4x32xf32, #tpu.memory_space<vmem>>, vector<1x4x32xf32>,
    } else {
    }
    return
  }
  func.func @transform_0(%arg0: i32, %arg1: i32) -> (i32, i32, i32) {
    %c0_i32 = arith.constant 0 : i32
    %c0_i32_0 = arith.constant 0 : i32
    %c0_i32_1 = arith.constant 0 : i32
    return %arg0, %c0_i32, %c0_i32_0 : i32, i32, i32
  }
  func.func @transform_1(%arg0: i32, %arg1: i32) -> (i32, i32, i32) {
    %c0_i32 = arith.constant 0 : i32
    %c0_i32_0 = arith.constant 0 : i32
    %c0_i32_1 = arith.constant 0 : i32
    return %arg0, %c0_i32, %c0_i32_0 : i32, i32, i32
  }
  func.func @transform_2(%arg0: i32, %arg1: i32) -> (i32, i32, i32) {
    %c0_i32 = arith.constant 0 : i32
    %c0_i32_0 = arith.constant 0 : i32
    %c0_i32_1 = arith.constant 0 : i32
    %c0_i32_2 = arith.constant 0 : i32
    return %c0_i32, %c0_i32_0, %c0_i32_1 : i32, i32, i32
  }
  func.func @transform_3(%arg0: i32, %arg1: i32) -> (i32, i32, i32) {
    %c0_i32 = arith.constant 0 : i32
    %c0_i32_0 = arith.constant 0 : i32
    %c0_i32_1 = arith.constant 0 : i32
    %c0_i32_2 = arith.constant 0 : i32
    return %c0_i32, %c0_i32_0, %c0_i32_1 : i32, i32, i32
  }
  func.func @transform_4(%arg0: i32, %arg1: i32) -> (i32, i32, i32) {
    %c0_i32 = arith.constant 0 : i32
    %c0_i32_0 = arith.constant 0 : i32
    %c0_i32_1 = arith.constant 0 : i32
    %c0_i32_2 = arith.constant 0 : i32
    return %c0_i32, %c0_i32_0, %c0_i32_1 : i32, i32, i32
  }
  func.func @transform_5(%arg0: i32, %arg1: i32) -> (i32, i32, i32) {
    %c0_i32 = arith.constant 0 : i32
    %c0_i32_0 = arith.constant 0 : i32
    %c0_i32_1 = arith.constant 0 : i32
    %c0_i32_2 = arith.constant 0 : i32
    return %c0_i32, %c0_i32_0, %c0_i32_1 : i32, i32, i32
  }
  func.func @transform_6(%arg0: i32, %arg1: i32) -> (i32, i32, i32) {
    %c0_i32 = arith.constant 0 : i32
    %c0_i32_0 = arith.constant 0 : i32
    %c0_i32_1 = arith.constant 0 : i32
    %c0_i32_2 = arith.constant 0 : i32
    return %c0_i32, %c0_i32_0, %c0_i32_1 : i32, i32, i32
  }
  func.func @transform_7(%arg0: i32, %arg1: i32) -> (i32, i32, i32) {
    %c0_i32 = arith.constant 0 : i32
    %c0_i32_0 = arith.constant 0 : i32
    %c0_i32_1 = arith.constant 0 : i32
    %c0_i32_2 = arith.constant 0 : i32
    return %c0_i32, %c0_i32_0, %c0_i32_1 : i32, i32, i32
  }
  func.func @transform_8(%arg0: i32, %arg1: i32) -> (i32, i32) {
    %c0_i32 = arith.constant 0 : i32
    %c0_i32_0 = arith.constant 0 : i32
    %c0_i32_1 = arith.constant 0 : i32
    return %c0_i32, %c0_i32_0 : i32, i32
  }
  func.func @transform_9(%arg0: i32, %arg1: i32) -> (i32, i32, i32) {
    %c0_i32 = arith.constant 0 : i32
    %c0_i32_0 = arith.constant 0 : i32
    %c0_i32_1 = arith.constant 0 : i32
    return %arg0, %c0_i32, %c0_i32_0 : i32, i32, i32
  }
}

</mosaic_0001>

<llo_original>
// kernel: tpu_custom_call.1
$region0: #{tpu_custom_call.1}
  #allocation0 [shape = 'u32[]', space=smem, size = 0x4, offset = 0x4, fixed_abs, tag = 'smem constant byte address 0x4 - core index']
  #allocation1 [shape = 'u32[144,128]{1,0:T(1,128)}', space=vmem, size = 0x12000, scoped, tag = 'internal scratch']
  #allocation2 [shape = 'f32[4,8,32]{2,1,0:T(8,128)}', space=vmem, size = 0x4000, scoped, tag = 'scratch operand']
  %s0 = inlined_call_operand.vmem [shape: f32[4,8,32], index: 0, kind: input, shape index: {}]
  %s1 = inlined_call_operand.vmem [shape: f32[4,8,1], index: 1, kind: input, shape index: {}]
  %s2 = inlined_call_operand.hbm [shape: bf16[2,32,64], index: 2, kind: input, shape index: {}]
  %s3 = inlined_call_operand.hbm [shape: bf16[2,32,32], index: 3, kind: input, shape index: {}]
  %s4 = inlined_call_operand.hbm [shape: bf16[2,32,32], index: 4, kind: input, shape index: {}]
  %s5 = inlined_call_operand.hbm [shape: bf16[2,32,32], index: 5, kind: input, shape index: {}]
  %s6 = inlined_call_operand.hbm [shape: bf16[2,32,32], index: 6, kind: input, shape index: {}]
  %s7 = inlined_call_operand.vmem [shape: f32[2,8,32], index: 7, kind: input, shape index: {}]
  %s8 = inlined_call_operand.vmem [shape: f32[2,32], index: 8, kind: input, shape index: {}]
  %s9 = inlined_call_operand.hbm [shape: f32[1,4,32], index: 9, kind: output, shape index: {}]
  %s10 = sld [smem:[#allocation0]]
  $region97: #{tpu_custom_call.1} parent=0
    _
  %s12 = ssub.s32 1, %s10
  %s13 = scalar_select 0, %s12, %s10
  $region1: #{tpu_custom_call.1} parent=0
    #allocation3 [shape = 'u8[16384]{0}', space=vmem, size = 0x4000, scoped, tag = 'input window, operand 2, single buffered']
    #allocation4 [shape = 's32[2]{0}', space=sflag, size = 0x8, scoped, tag = 'scoped memory for tpu_custom_call.1']
    #allocation5 [shape = 's32[2]{0}', space=sflag, size = 0x8, scoped, tag = 'scoped memory for tpu_custom_call.1']
    #allocation6 [shape = 'u8[16384]{0}', space=vmem, size = 0x4000, scoped, tag = 'input window, operand 3, single buffered']
    #allocation7 [shape = 's32[1]{0}', space=sflag, size = 0x4, scoped, tag = 'scoped memory for tpu_custom_call.1']
    #allocation8 [shape = 'u8[16384]{0}', space=vmem, size = 0x4000, scoped, tag = 'input window, operand 4, single buffered']
    #allocation9 [shape = 'u8[16384]{0}', space=vmem, size = 0x4000, scoped, tag = 'input window, operand 5, single buffered']
    #allocation10 [shape = 's32[1]{0}', space=sflag, size = 0x4, scoped, tag = 'scoped memory for tpu_custom_call.1']
    #allocation11 [shape = 'u8[16384]{0}', space=vmem, size = 0x4000, scoped, tag = 'input window, operand 6, single buffered']
    #allocation12 [shape = 'u8[2048]{0}', space=vmem, size = 0x800, scoped, tag = 'output window, operand 0, single buffered']
    %14 = vsyncpa [#allocation4], 0
    %15 = vsyncpa [#allocation7], 0
    %16 = vsyncpa [#allocation10], 0
    %17 = vsyncpa [#allocation5], 0
    loop: start=0, step=1, limit=4
    $region2: #{tpu_custom_call.1} parent=1 // loop_pre_header
      _
    $region3: #{tpu_custom_call.1} parent=1 // loop_header
      %s19 = sphi 0, %s23
      %p20 = scmp.ge.s32.totalorder %s19, 4
      %s26 = sphi 0, %s38
      %s27 = sphi 0, %s34
      %s28 = sphi 0, %s26
      %s29 = sphi 0, %s27
      %s30 = sphi 0, %s28
      %s31 = sphi 0, %s29
      %s41 = sphi 0, %s43
      %s44 = sphi 0, %s41
      %s45 = sphi 0, %s44
      %s61 = sphi 0, %s45
      %s67 = sphi 0, %s69
      %s70 = sphi 0, %s67
      %s71 = sphi 0, %s70
      %s87 = sphi 0, %s71
      %s91 = sphi 0, %s91
      %s93 = sphi 0, %s91
      %s94 = sphi 0, %s93
      %s108 = sphi 0, %s94
      %s112 = sphi 0, %s112
      %s114 = sphi 0, %s112
      %s115 = sphi 0, %s114
      %s129 = sphi 0, %s115
      %s133 = sphi 0, %s133
      %s135 = sphi 0, %s133
      %s136 = sphi 0, %s135
      %s150 = sphi 0, %s136
      %s154 = sphi 0, %s154
      %s156 = sphi 0, %s154
      %s157 = sphi 0, %s156
      %s171 = sphi 0, %s157
      %s175 = sphi 0, %s175
      %s177 = sphi 0, %s175
      %s178 = sphi 0, %s177
      %s192 = sphi 0, %s178
      %s196 = sphi 0, %s196
      %s198 = sphi 0, %s196
      %s199 = sphi 0, %s198
      %s213 = sphi 0, %s199
      %s217 = sphi 0, %s217
      %s219 = sphi 0, %s217
      %s220 = sphi 0, %s219
      %s234 = sphi 0, %s220
      %s240 = sphi 0, %s242
      %s243 = sphi 0, %s240
      %s244 = sphi 0, %s243
      %s260 = sphi 0, %s244
    $region4: #{tpu_custom_call.1} parent=1 // loop_header_branch
      %22 = sbr.rel (%p20) target = $region8
    $region5: #{tpu_custom_call.1} parent=1 // loop_body
      %s24 = ssub.s32 %s19, 1
      %s25 = ssub.s32 %s19, 2
      %s32 = sadd.s32 1, %s27
      %p33 = scmp.ge.s32.totalorder %s32, 2
      %s34 = scalar_select %p33, 0, %s32
      %s35 = sadd.s32 1, %s26
      %s36 = scalar_select %p33, %s35, %s26
      %p37 = scmp.ge.s32.totalorder %s36, 1
      %s38 = scalar_select %p37, 0, %s36
      %s39 = ssub.s32 %s26, %s38
      %p40 = scmp.eq.s32.totalorder %s39, 0
      %s42 = sadd.s32 %s41, 1
      %s43 = scalar_select %p40, %s41, %s42
      %p46 = pneg %p40
      %p47 = scmp.eq.s32.totalorder %s19, 1
      %p48 = por %p46, %p47
      %p49 = scmp.ne.s32.totalorder %s41, %s44
      %p50 = scmp.eq.s32.totalorder %s19, 0
      %p51 = por %p49, %p50
      %p52 = scmp.ne.s32.totalorder %s41, %s44
      %p53 = scmp.eq.s32.totalorder %s24, 1
      %p54 = por %p52, %p53
      %p55 = scmp.ne.s32.totalorder %s44, %s45
      %p56 = scmp.eq.s32.totalorder %s24, 0
      %p57 = por %p55, %p56
      %p58 = scmp.ne.s32.totalorder %s44, %s45
      %p59 = scmp.eq.s32.totalorder %s25, 1
      %p60 = por %p58, %p59
      %p62 = scmp.ne.s32.totalorder %s45, %s61
      %p63 = scmp.eq.s32.totalorder %s25, 0
      %p64 = por %p62, %p63
      %s65 = ssub.s32 %s26, %s38
      %p66 = scmp.eq.s32.totalorder %s65, 0
      %s68 = sadd.s32 %s67, 1
      %s69 = scalar_select %p66, %s67, %s68
      %p72 = pneg %p66
      %p73 = scmp.eq.s32.totalorder %s19, 1
      %p74 = por %p72, %p73
      %p75 = scmp.ne.s32.totalorder %s67, %s70
      %p76 = scmp.eq.s32.totalorder %s19, 0
      %p77 = por %p75, %p76
      %p78 = scmp.ne.s32.totalorder %s67, %s70
      %p79 = scmp.eq.s32.totalorder %s24, 1
      %p80 = por %p78, %p79
      %p81 = scmp.ne.s32.totalorder %s70, %s71
      %p82 = scmp.eq.s32.totalorder %s24, 0
      %p83 = por %p81, %p82
      %p84 = scmp.ne.s32.totalorder %s70, %s71
      %p85 = scmp.eq.s32.totalorder %s25, 1
      %p86 = por %p84, %p85
      %p88 = scmp.ne.s32.totalorder %s71, %s87
      %p89 = scmp.eq.s32.totalorder %s25, 0
      %p90 = por %p88, %p89
      %s92 = sadd.s32 %s91, 1
      %p95 = scmp.eq.s32.totalorder %s19, 1
      %p96 = scmp.ne.s32.totalorder %s91, %s93
      %p97 = scmp.eq.s32.totalorder %s19, 0
      %p98 = por %p96, %p97
      %p99 = scmp.ne.s32.totalorder %s91, %s93
      %p100 = scmp.eq.s32.totalorder %s24, 1
      %p101 = por %p99, %p100
      %p102 = scmp.ne.s32.totalorder %s93, %s94
      %p103 = scmp.eq.s32.totalorder %s24, 0
      %p104 = por %p102, %p103
      %p105 = scmp.ne.s32.totalorder %s93, %s94
      %p106 = scmp.eq.s32.totalorder %s25, 1
      %p107 = por %p105, %p106
      %p109 = scmp.ne.s32.totalorder %s94, %s108
      %p110 = scmp.eq.s32.totalorder %s25, 0
      %p111 = por %p109, %p110
      %s113 = sadd.s32 %s112, 1
      %p116 = scmp.eq.s32.totalorder %s19, 1
      %p117 = scmp.ne.s32.totalorder %s112, %s114
      %p118 = scmp.eq.s32.totalorder %s19, 0
      %p119 = por %p117, %p118
      %p120 = scmp.ne.s32.totalorder %s112, %s114
      %p121 = scmp.eq.s32.totalorder %s24, 1
      %p122 = por %p120, %p121
      %p123 = scmp.ne.s32.totalorder %s114, %s115
      %p124 = scmp.eq.s32.totalorder %s24, 0
      %p125 = por %p123, %p124
      %p126 = scmp.ne.s32.totalorder %s114, %s115
      %p127 = scmp.eq.s32.totalorder %s25, 1
      %p128 = por %p126, %p127
      %p130 = scmp.ne.s32.totalorder %s115, %s129
      %p131 = scmp.eq.s32.totalorder %s25, 0
      %p132 = por %p130, %p131
      %s134 = sadd.s32 %s133, 1
      %p137 = scmp.eq.s32.totalorder %s19, 1
      %p138 = scmp.ne.s32.totalorder %s133, %s135
      %p139 = scmp.eq.s32.totalorder %s19, 0
      %p140 = por %p138, %p139
      %p141 = scmp.ne.s32.totalorder %s133, %s135
      %p142 = scmp.eq.s32.totalorder %s24, 1
      %p143 = por %p141, %p142
      %p144 = scmp.ne.s32.totalorder %s135, %s136
      %p145 = scmp.eq.s32.totalorder %s24, 0
      %p146 = por %p144, %p145
      %p147 = scmp.ne.s32.totalorder %s135, %s136
      %p148 = scmp.eq.s32.totalorder %s25, 1
      %p149 = por %p147, %p148
      %p151 = scmp.ne.s32.totalorder %s136, %s150
      %p152 = scmp.eq.s32.totalorder %s25, 0
      %p153 = por %p151, %p152
      %s155 = sadd.s32 %s154, 1
      %p158 = scmp.eq.s32.totalorder %s19, 1
      %p159 = scmp.ne.s32.totalorder %s154, %s156
      %p160 = scmp.eq.s32.totalorder %s19, 0
      %p161 = por %p159, %p160
      %p162 = scmp.ne.s32.totalorder %s154, %s156
      %p163 = scmp.eq.s32.totalorder %s24, 1
      %p164 = por %p162, %p163
      %p165 = scmp.ne.s32.totalorder %s156, %s157
      %p166 = scmp.eq.s32.totalorder %s24, 0
      %p167 = por %p165, %p166
      %p168 = scmp.ne.s32.totalorder %s156, %s157
      %p169 = scmp.eq.s32.totalorder %s25, 1
      %p170 = por %p168, %p169
      %p172 = scmp.ne.s32.totalorder %s157, %s171
      %p173 = scmp.eq.s32.totalorder %s25, 0
      %p174 = por %p172, %p173
      %s176 = sadd.s32 %s175, 1
      %p179 = scmp.eq.s32.totalorder %s19, 1
      %p180 = scmp.ne.s32.totalorder %s175, %s177
      %p181 = scmp.eq.s32.totalorder %s19, 0
      %p182 = por %p180, %p181
      %p183 = scmp.ne.s32.totalorder %s175, %s177
      %p184 = scmp.eq.s32.totalorder %s24, 1
      %p185 = por %p183, %p184
      %p186 = scmp.ne.s32.totalorder %s177, %s178
      %p187 = scmp.eq.s32.totalorder %s24, 0
      %p188 = por %p186, %p187
      %p189 = scmp.ne.s32.totalorder %s177, %s178
      %p190 = scmp.eq.s32.totalorder %s25, 1
      %p191 = por %p189, %p190
      %p193 = scmp.ne.s32.totalorder %s178, %s192
      %p194 = scmp.eq.s32.totalorder %s25, 0
      %p195 = por %p193, %p194
      %s197 = sadd.s32 %s196, 1
      %p200 = scmp.eq.s32.totalorder %s19, 1
      %p201 = scmp.ne.s32.totalorder %s196, %s198
      %p202 = scmp.eq.s32.totalorder %s19, 0
      %p203 = por %p201, %p202
      %p204 = scmp.ne.s32.totalorder %s196, %s198
      %p205 = scmp.eq.s32.totalorder %s24, 1
      %p206 = por %p204, %p205
      %p207 = scmp.ne.s32.totalorder %s198, %s199
      %p208 = scmp.eq.s32.totalorder %s24, 0
      %p209 = por %p207, %p208
      %p210 = scmp.ne.s32.totalorder %s198, %s199
      %p211 = scmp.eq.s32.totalorder %s25, 1
      %p212 = por %p210, %p211
      %p214 = scmp.ne.s32.totalorder %s199, %s213
      %p215 = scmp.eq.s32.totalorder %s25, 0
      %p216 = por %p214, %p215
      %s218 = sadd.s32 %s217, 1
      %p221 = scmp.eq.s32.totalorder %s19, 1
      %p222 = scmp.ne.s32.totalorder %s217, %s219
      %p223 = scmp.eq.s32.totalorder %s19, 0
      %p224 = por %p222, %p223
      %p225 = scmp.ne.s32.totalorder %s217, %s219
      %p226 = scmp.eq.s32.totalorder %s24, 1
      %p227 = por %p225, %p226
      %p228 = scmp.ne.s32.totalorder %s219, %s220
      %p229 = scmp.eq.s32.totalorder %s24, 0
      %p230 = por %p228, %p229
      %p231 = scmp.ne.s32.totalorder %s219, %s220
      %p232 = scmp.eq.s32.totalorder %s25, 1
      %p233 = por %p231, %p232
      %p235 = scmp.ne.s32.totalorder %s220, %s234
      %p236 = scmp.eq.s32.totalorder %s25, 0
      %p237 = por %p235, %p236
      %s238 = ssub.s32 %s26, %s38
      %p239 = scmp.eq.s32.totalorder %s238, 0
      %s241 = sadd.s32 %s240, 1
      %s242 = scalar_select %p239, %s240, %s241
      %p245 = pneg %p239
      %p246 = scmp.eq.s32.totalorder %s19, 1
      %p247 = por %p245, %p246
      %p248 = scmp.ne.s32.totalorder %s240, %s243
      %p249 = scmp.eq.s32.totalorder %s19, 0
      %p250 = por %p248, %p249
      %p251 = scmp.ne.s32.totalorder %s240, %s243
      %p252 = scmp.eq.s32.totalorder %s24, 1
      %p253 = por %p251, %p252
      %p254 = scmp.ne.s32.totalorder %s243, %s244
      %p255 = scmp.eq.s32.totalorder %s24, 0
      %p256 = por %p254, %p255
      %p257 = scmp.ne.s32.totalorder %s243, %s244
      %p258 = scmp.eq.s32.totalorder %s25, 1
      %p259 = por %p257, %p258
      %p261 = scmp.ne.s32.totalorder %s244, %s260
      %p262 = scmp.eq.s32.totalorder %s25, 0
      %p263 = por %p261, %p262
      %p264 = scmp.le.s32.totalorder 1, %s19
      %p265 = scmp.lt.s32.totalorder %s19, 3
      %p266 = pnand %p264, %p265
      %p267 = pneg %p266
      // Predicated region
      $region9: #{tpu_custom_call.1} parent=5 // pred_check
        _
      $region10: #{tpu_custom_call.1} parent=5 // pred_check_branch
        %269 = sbr.rel (%p266) target = $region12
      $region11: #{tpu_custom_call.1} parent=5 // pred_region
        %s270 = ssub.s32 %s19, 1
        // Predicated region
        $region13: #{tpu_custom_call.1} parent=11 // pred_check
          %p271 = pneg %p57
        $region14: #{tpu_custom_call.1} parent=11 // pred_check_branch
          %273 = sbr.rel (%p271) target = $region16
        $region15: #{tpu_custom_call.1} parent=11 // pred_region
          %s274 = smul.u32 4, %s28
          %p275 = scmp.lt.s32.totalorder %s274, 3
          %s276 = scalar_select %p275, %s274, 3
          %s277 = smul.addr %s276, 8
          %s278 = scalar_lea.vmem %s0, %s277
          %s279 = smul.u32 4, %s28
        $region16: #{tpu_custom_call.1} parent=11 // pred_fallthru
          _
        // Predicated region
        $region17: #{tpu_custom_call.1} parent=11 // pred_check
          %p280 = pneg %p83
        $region18: #{tpu_custom_call.1} parent=11 // pred_check_branch
          %282 = sbr.rel (%p280) target = $region20
        $region19: #{tpu_custom_call.1} parent=11 // pred_region
          %s283 = smul.u32 4, %s28
          %p284 = scmp.lt.s32.totalorder %s283, 3
          %s285 = scalar_select %p284, %s283, 3
          %s286 = smul.addr %s285, 8
          %s287 = scalar_lea.vmem %s1, %s286
          %s288 = smul.u32 4, %s28
        $region20: #{tpu_custom_call.1} parent=11 // pred_fallthru
          _
        // Predicated region
        $region21: #{tpu_custom_call.1} parent=11 // pred_check
          %p289 = pneg %p104
        $region22: #{tpu_custom_call.1} parent=11 // pred_check_branch
          %291 = sbr.rel (%p289) target = $region24
        $region23: #{tpu_custom_call.1} parent=11 // pred_region
          %s293 = ssub.s32 512, 512
          %294 = vsyncadd [#allocation4], %s293
          %s295 = sshll.u32 [#allocation3], 4
          %s296 = int_to_ptr.vmem [resolvable:$true] %s295
          %301 = dma.hbm_to_vmem [thread:$0]  %s2, 512, %s296, [#allocation4], 64, 64, 4
        $region24: #{tpu_custom_call.1} parent=11 // pred_fallthru
          _
        // Predicated region
        $region25: #{tpu_custom_call.1} parent=11 // pred_check
          %p302 = pneg %p125
        $region26: #{tpu_custom_call.1} parent=11 // pred_check_branch
          %304 = sbr.rel (%p302) target = $region28
        $region27: #{tpu_custom_call.1} parent=11 // pred_region
          %s306 = ssub.s32 512, 512
          %307 = vsyncadd [#allocation7], %s306
          %s308 = sshll.u32 [#allocation6], 4
          %s309 = int_to_ptr.vmem [resolvable:$true] %s308
          %314 = dma.hbm_to_vmem [thread:$0]  %s3, 512, %s309, [#allocation7], 64, 64, 4
        $region28: #{tpu_custom_call.1} parent=11 // pred_fallthru
          _
        // Predicated region
        $region29: #{tpu_custom_call.1} parent=11 // pred_check
          %p315 = pneg %p146
        $region30: #{tpu_custom_call.1} parent=11 // pred_check_branch
          %317 = sbr.rel (%p315) target = $region32
        $region31: #{tpu_custom_call.1} parent=11 // pred_region
          %s319 = ssub.s32 512, 512
          %320 = vsyncadd [#allocation7], %s319
          %s321 = sshll.u32 [#allocation8], 4
          %s322 = int_to_ptr.vmem [resolvable:$true] %s321
          %327 = dma.hbm_to_vmem [thread:$0]  %s4, 512, %s322, [#allocation7], 64, 64, 4
        $region32: #{tpu_custom_call.1} parent=11 // pred_fallthru
          _
        // Predicated region
        $region33: #{tpu_custom_call.1} parent=11 // pred_check
          %p328 = pneg %p167
        $region34: #{tpu_custom_call.1} parent=11 // pred_check_branch
          %330 = sbr.rel (%p328) target = $region36
        $region35: #{tpu_custom_call.1} parent=11 // pred_region
          %s332 = ssub.s32 512, 512
          %333 = vsyncadd [#allocation10], %s332
          %s334 = sshll.u32 [#allocation9], 4
          %s335 = int_to_ptr.vmem [resolvable:$true] %s334
          %340 = dma.hbm_to_vmem [thread:$0]  %s5, 512, %s335, [#allocation10], 64, 64, 4
        $region36: #{tpu_custom_call.1} parent=11 // pred_fallthru
          _
        // Predicated region
        $region37: #{tpu_custom_call.1} parent=11 // pred_check
          %p341 = pneg %p188
        $region38: #{tpu_custom_call.1} parent=11 // pred_check_branch
          %343 = sbr.rel (%p341) target = $region40
        $region39: #{tpu_custom_call.1} parent=11 // pred_region
          %s345 = ssub.s32 512, 512
          %346 = vsyncadd [#allocation10], %s345
          %s347 = sshll.u32 [#allocation11], 4
          %s348 = int_to_ptr.vmem [resolvable:$true] %s347
          %353 = dma.hbm_to_vmem [thread:$0]  %s6, 512, %s348, [#allocation10], 64, 64, 4
        $region40: #{tpu_custom_call.1} parent=11 // pred_fallthru
          _
        // Predicated region
        $region41: #{tpu_custom_call.1} parent=11 // pred_check
          %p354 = pneg %p209
        $region42: #{tpu_custom_call.1} parent=11 // pred_check_branch
          %356 = sbr.rel (%p354) target = $region44
        $region43: #{tpu_custom_call.1} parent=11 // pred_region
          _
        $region44: #{tpu_custom_call.1} parent=11 // pred_fallthru
          _
        // Predicated region
        $region45: #{tpu_custom_call.1} parent=11 // pred_check
          %p357 = pneg %p230
        $region46: #{tpu_custom_call.1} parent=11 // pred_check_branch
          %359 = sbr.rel (%p357) target = $region48
        $region47: #{tpu_custom_call.1} parent=11 // pred_region
          _
        $region48: #{tpu_custom_call.1} parent=11 // pred_fallthru
          _
      $region12: #{tpu_custom_call.1} parent=5 // pred_fallthru
        _
      %p360 = scmp.lt.s32.totalorder %s19, 2
      // Predicated region
      $region49: #{tpu_custom_call.1} parent=5 // pred_check
        %p361 = pneg %p360
      $region50: #{tpu_custom_call.1} parent=5 // pred_check_branch
        %363 = sbr.rel (%p361) target = $region52
      $region51: #{tpu_custom_call.1} parent=5 // pred_region
        _
      $region52: #{tpu_custom_call.1} parent=5 // pred_fallthru
        _
      %p364 = scmp.le.s32.totalorder 1, %s19
      %p365 = scmp.lt.s32.totalorder %s19, 3
      %p366 = pnand %p364, %p365
      %p367 = pneg %p366
      // Predicated region
      $region53: #{tpu_custom_call.1} parent=5 // pred_check
        _
      $region54: #{tpu_custom_call.1} parent=5 // pred_check_branch
        %369 = sbr.rel (%p366) target = $region56
      $region55: #{tpu_custom_call.1} parent=5 // pred_region
        %s370 = ssub.s32 %s19, 1
        // Predicated region
        $region57: #{tpu_custom_call.1} parent=55 // pred_check
          %p371 = pneg %p104
        $region58: #{tpu_custom_call.1} parent=55 // pred_check_branch
          %373 = sbr.rel (%p371) target = $region60
        $region59: #{tpu_custom_call.1} parent=55 // pred_region
          %374 = dma.done [#allocation4], 512
        $region60: #{tpu_custom_call.1} parent=55 // pred_fallthru
          _
        // Predicated region
        $region61: #{tpu_custom_call.1} parent=55 // pred_check
          %p375 = pneg %p125
        $region62: #{tpu_custom_call.1} parent=55 // pred_check_branch
          %377 = sbr.rel (%p375) target = $region64
        $region63: #{tpu_custom_call.1} parent=55 // pred_region
          %378 = dma.done [#allocation7], 512
        $region64: #{tpu_custom_call.1} parent=55 // pred_fallthru
          _
        // Predicated region
        $region65: #{tpu_custom_call.1} parent=55 // pred_check
          %p379 = pneg %p146
        $region66: #{tpu_custom_call.1} parent=55 // pred_check_branch
          %381 = sbr.rel (%p379) target = $region68
        $region67: #{tpu_custom_call.1} parent=55 // pred_region
          %382 = dma.done [#allocation7], 512
        $region68: #{tpu_custom_call.1} parent=55 // pred_fallthru
          _
        // Predicated region
        $region69: #{tpu_custom_call.1} parent=55 // pred_check
          %p383 = pneg %p167
        $region70: #{tpu_custom_call.1} parent=55 // pred_check_branch
          %385 = sbr.rel (%p383) target = $region72
        $region71: #{tpu_custom_call.1} parent=55 // pred_region
          %386 = dma.done [#allocation10], 512
        $region72: #{tpu_custom_call.1} parent=55 // pred_fallthru
          _
        // Predicated region
        $region73: #{tpu_custom_call.1} parent=55 // pred_check
          %p387 = pneg %p188
        $region74: #{tpu_custom_call.1} parent=55 // pred_check_branch
          %389 = sbr.rel (%p387) target = $region76
        $region75: #{tpu_custom_call.1} parent=55 // pred_region
          %390 = dma.done [#allocation10], 512
        $region76: #{tpu_custom_call.1} parent=55 // pred_fallthru
          _
        %s391 = smul.u32 4, %s28
        %p392 = scmp.lt.s32.totalorder %s391, 3
        %s393 = scalar_select %p392, %s391, 3
        %s394 = smul.addr %s393, 8
        %s395 = scalar_lea.vmem %s0, %s394
        %p396 = pneg %p57
        %p397 = pneg %p54
        %s398 = smul.u32 4, %s28
        %p399 = scmp.lt.s32.totalorder %s398, 3
        %s400 = scalar_select %p399, %s398, 3
        %s401 = smul.addr %s400, 8
        %s402 = scalar_lea.vmem %s1, %s401
        %p403 = pneg %p83
        %p404 = pneg %p80
        %p405 = pneg %p104
        %p406 = pneg %p101
        %p407 = pneg %p125
        %p408 = pneg %p122
        %p409 = pneg %p146
        %p410 = pneg %p143
        %p411 = pneg %p167
        %p412 = pneg %p164
        %p413 = pneg %p188
        %p414 = pneg %p185
        %p415 = pneg %p209
        %p416 = pneg %p206
        %p417 = pneg %p230
        %p418 = pneg %p227
        %p419 = pneg %p256
        %p420 = pneg %p253
        %s421 = smul.u32 4, %s28
        %p422 = scmp.lt.s32.totalorder %s421, 3
        %s423 = scalar_select %p422, %s421, 3
        %s424 = smul.addr %s423, 8
        %s425 = scalar_lea.vmem %s0, %s424
        %s426 = smul.u32 4, %s28
        %s427 = smul.u32 4, %s28
        %p428 = scmp.lt.s32.totalorder %s427, 3
        %s429 = scalar_select %p428, %s427, 3
        %s430 = smul.addr %s429, 8
        %s431 = scalar_lea.vmem %s1, %s430
        %s432 = smul.u32 4, %s28
        %p434 = scmp.eq.s32.totalorder %s29, 0
        // Predicated region
        $region77: #{tpu_custom_call.1} parent=55 // pred_check
          %p435 = pneg %p434
        $region78: #{tpu_custom_call.1} parent=55 // pred_check_branch
          %437 = sbr.rel (%p435) target = $region80
        $region79: #{tpu_custom_call.1} parent=55 // pred_region
          %v438 = vld [vmem:[%s425] sm:$0xff]
          %v439 = vld [vmem:[%s425 + $0x8] sm:$0xff]
          %v440 = vld [vmem:[%s425 + $0x10] sm:$0xff]
          %v441 = vld [vmem:[%s425 + $0x18] sm:$0xff]
          %vm442 = vcmask 261120
          %443 = vst.msk [vmem:[#allocation2] sm:$0xff] %vm442, %v438
          %444 = vst.msk [vmem:[#allocation2 + $0x8] sm:$0xff] %vm442, %v439
          %445 = vst.msk [vmem:[#allocation2 + $0x10] sm:$0xff] %vm442, %v440
          %446 = vst.msk [vmem:[#allocation2 + $0x18] sm:$0xff] %vm442, %v441
        $region80: #{tpu_custom_call.1} parent=55 // pred_fallthru
          _
        %v447 = vld [vmem:[#allocation2] sm:$0xff]
        %v448 = vld [vmem:[#allocation2 + $0x8] sm:$0xff]
        %v449 = vld [vmem:[#allocation2 + $0x10] sm:$0xff]
        %v450 = vld [vmem:[#allocation2 + $0x18] sm:$0xff]
        %s451 = smul.u32 %s29, 8
        %s452 = scalar_lea.vmem %s7, %s451
        %v453 = vld [vmem:[%s452] sm:$0xff]
        %vm454 = vcmask 261120
        %v455 = vsel %vm454, %v447, 0.0
        %456 = vadd.xlane.f32.xlu0 %v455
        %v457 = vpop.xlane.xlu0 %456
        %v458 = vsel %vm454, %v448, 0.0
        %459 = vadd.xlane.f32.xlu0 %v458
        %v460 = vpop.xlane.xlu0 %459
        %v461 = vsel %vm454, %v449, 0.0
        %462 = vadd.xlane.f32.xlu0 %v461
        %v463 = vpop.xlane.xlu0 %462
        %v464 = vsel %vm454, %v450, 0.0
        %465 = vadd.xlane.f32.xlu0 %v464
        %v466 = vpop.xlane.xlu0 %465
        %v467 = vrcp.pop 32.0
        %v468 = vmul.f32 %v457, %v467
        %v469 = vmul.f32 %v460, %v467
        %v470 = vmul.f32 %v463, %v467
        %v471 = vmul.f32 %v466, %v467
        %v472 = vsub.f32 %v447, %v468
        %v473 = vsub.f32 %v448, %v469
        %v474 = vsub.f32 %v449, %v470
        %v475 = vsub.f32 %v450, %v471
        %v476 = vmul.f32 %v472, %v472
        %v477 = vmul.f32 %v473, %v473
        %v478 = vmul.f32 %v474, %v474
        %v479 = vmul.f32 %v475, %v475
        %v480 = vsel %vm454, %v476, 0.0
        %481 = vadd.xlane.f32.xlu0 %v480
        %v482 = vpop.xlane.xlu0 %481
        %v483 = vsel %vm454, %v477, 0.0
        %484 = vadd.xlane.f32.xlu0 %v483
        %v485 = vpop.xlane.xlu0 %484
        %v486 = vsel %vm454, %v478, 0.0
        %487 = vadd.xlane.f32.xlu0 %v486
        %v488 = vpop.xlane.xlu0 %487
        %v489 = vsel %vm454, %v479, 0.0
        %490 = vadd.xlane.f32.xlu0 %v489
        %v491 = vpop.xlane.xlu0 %490
        %v492 = vmul.f32 %v482, %v467
        %v493 = vmul.f32 %v485, %v467
        %v494 = vmul.f32 %v488, %v467
        %v495 = vmul.f32 %v491, %v467
        %v496 = vadd.f32 %v492, 1e-05
        %v497 = vadd.f32 %v493, 1e-05
        %v498 = vadd.f32 %v494, 1e-05
        %v499 = vadd.f32 %v495, 1e-05
        %v500 = vrsqrt.pop %v496
        %v501 = vrsqrt.pop %v497
        %v502 = vrsqrt.pop %v498
        %v503 = vrsqrt.pop %v499
        %v504 = vmul.f32 %v472, %v500
        %v505 = vmul.f32 %v473, %v501
        %v506 = vmul.f32 %v474, %v502
        %v507 = vmul.f32 %v475, %v503
        %v508 = vlaneseq
        %v509 = vshrl.u32 %v508, 7
        %v510 = vsub.s32 6, %v509
        %v511 = vrot.slane %v453, %v510
        %v512 = vmul.f32 %v504, %v511
        %v513 = vmul.f32 %v505, %v511
        %v514 = vmul.f32 %v506, %v511
        %v515 = vmul.f32 %v507, %v511
        %v516 = vlaneseq
        %v517 = vshrl.u32 %v516, 7
        %v518 = vsub.s32 7, %v517
        %v519 = vrot.slane %v453, %v518
        %v520 = vadd.f32 %v512, %v519
        %v521 = vadd.f32 %v513, %v519
        %v522 = vadd.f32 %v514, %v519
        %v523 = vadd.f32 %v515, %v519
        %v524 = vpack.c.bf16 %v448, %v447
        %v525 = vpack.c.bf16 %v450, %v449
        %s526 = smul.u32 %s29, 4
        %s527 = smul.addr %s526, 4
        %s528 = scalar_lea.vmem [#allocation3], %s527
        %v529 = vld [vmem:[%s528] sm:$0xf]
        %v530 = vld [vmem:[%s528 + $0x4] sm:$0xf]
        %v531 = vld [vmem:[%s528 + $0x8] sm:$0xf]
        %v532 = vld [vmem:[%s528 + $0xc] sm:$0xf]
        %v537 = vunpack.c.l.b16 %v529
        %v538 = vunpack.c.l.b16 %v530
        %v539 = vunpack.c.l.b16 %v531
        %v540 = vunpack.c.l.b16 %v532
        %v541 = vpack.c.b16 %v538, %v537
        %v542 = vpack.c.b16 %v540, %v539
        %v546 = vsel %vm454, %v524, 0
        %v549 = vsel %vm454, %v525, 0
        %551 = vmatprep.subr.bf16.mxu0 0
        %552 = vmatpush1.bf16.msra.mxu0 %v541
        %553 = vmatprep.subr.bf16.mxu0 0
        %554 = vmatpush1.bf16.msra.mxu0 %v542
        %555 = vmatprep.subr.bf16.mxu0 0
        %556 = vmatpush1.bf16.msra.mxu0 0
        %557 = vmatprep.subr.bf16.mxu0 0
        %558 = vmatpush1.bf16.msra.mxu0 0
        %559 = vmatprep.subr.bf16.mxu0 0
        %560 = vmatpush1.bf16.msra.mxu0 0
        %561 = vmatprep.subr.bf16.mxu0 0
        %562 = vmatpush1.bf16.msra.mxu0 0
        %563 = vmatprep.subr.bf16.mxu0 0
        %564 = vmatpush1.bf16.msra.mxu0 0
        %565 = vmatprep.subr.bf16.mxu0 0
        %566 = vmatpush1.bf16.msra.mxu0 0
        %567 = vmatprep.subr.bf16.mxu0 0
        %568 = vmatpush1.bf16.msra.mxu0 0
        %569 = vmatprep.subr.bf16.mxu0 0
        %570 = vmatpush1.bf16.msra.mxu0 0
        %571 = vmatprep.subr.bf16.mxu0 0
        %572 = vmatpush1.bf16.msra.mxu0 0
        %573 = vmatprep.subr.bf16.mxu0 0
        %574 = vmatpush1.bf16.msra.mxu0 0
        %575 = vmatprep.subr.bf16.mxu0 0
        %576 = vmatpush1.bf16.msra.mxu0 0
        %577 = vmatprep.subr.bf16.mxu0 0
        %578 = vmatpush1.bf16.msra.mxu0 0
        %579 = vmatprep.subr.bf16.mxu0 0
        %580 = vmatpush1.bf16.msra.mxu0 0
        %581 = vmatprep.subr.bf16.mxu0 0
        %582 = vmatpush1.bf16.msra.mxu0 0
        %583 = vmatprep.mubr.bf16.mxu0 0
        %584 = vmatmul.mubr.bf16.gmra.mrb[0].mxu0 %v546
        %v585 = vpop.f32.mrb[0].mxu0
        %v586 = vadd.f32 0.0, %v585
        %v587 = vpop.f32.mrb[0].mxu0
        %v588 = vpop.f32.mrb[0].mxu0
        %v589 = vadd.f32 0.0, %v588
        %v590 = vpop.f32.mrb[0].mxu0
        %591 = vmatprep.mubr.bf16.mxu0 0
        %592 = vmatmul.mubr.bf16.gmra.mrb[0].mxu0 %v549
        %v593 = vpop.f32.mrb[0].mxu0
        %v594 = vadd.f32 0.0, %v593
        %v595 = vpop.f32.mrb[0].mxu0
        %v596 = vpop.f32.mrb[0].mxu0
        %v597 = vadd.f32 0.0, %v596
        %v598 = vpop.f32.mrb[0].mxu0
        %599 = vdwg.mxu0
        %v600 = vlaneseq
        %v601 = vshrl.u32 %v600, 7
        %v602 = vsub.s32 0, %v601
        %v603 = vrot.slane %v453, %v602
        %v604 = vadd.f32 %v586, %v603
        %v605 = vadd.f32 %v589, %v603
        %v606 = vadd.f32 %v594, %v603
        %v607 = vadd.f32 %v597, %v603
        %v608 = vmul.f32 %v604, 0.25
        %v609 = vmul.f32 %v605, 0.25
        %v610 = vmul.f32 %v606, 0.25
        %v611 = vmul.f32 %v607, 0.25
        %v612 = vlaneseq
        %v613 = vshrl.u32 %v612, 7
        %v614 = vsub.s32 2, %v613
        %v615 = vrot.slane %v453, %v614
        %617 = vrot.lane.b32.xlu0 %v615, 32
        %v618 = vpop.permute.xlu0 %617
        %v620 = vadd.f32 %v586, %v618
        %v621 = vadd.f32 %v589, %v618
        %v622 = vadd.f32 %v594, %v618
        %v623 = vadd.f32 %v597, %v618
        %v624 = vpack.c.bf16 %v521, %v520
        %v625 = vpack.c.bf16 %v523, %v522
        %s626 = smul.addr %s526, 4
        %s627 = scalar_lea.vmem [#allocation6], %s626
        %v628 = vld [vmem:[%s627] sm:$0xf]
        %v629 = vld [vmem:[%s627 + $0x4] sm:$0xf]
        %v630 = vld [vmem:[%s627 + $0x8] sm:$0xf]
        %v631 = vld [vmem:[%s627 + $0xc] sm:$0xf]
        %v632 = vlaneseq
        %v633 = vshrl.u32 %v632, 7
        %v634 = vsub.s32 1, %v633
        %v635 = vrot.slane %v453, %v634
        %v640 = vunpack.c.l.b16 %v628
        %v641 = vunpack.c.l.b16 %v629
        %v642 = vunpack.c.l.b16 %v630
        %v643 = vunpack.c.l.b16 %v631
        %v644 = vpack.c.b16 %v641, %v640
        %v645 = vpack.c.b16 %v643, %v642
        %v649 = vsel %vm454, %v624, 0
        %v652 = vsel %vm454, %v625, 0
        %654 = vmatprep.subr.bf16.mxu0 0
        %655 = vmatpush1.bf16.msra.mxu0 %v644
        %656 = vmatprep.subr.bf16.mxu0 0
        %657 = vmatpush1.bf16.msra.mxu0 %v645
        %658 = vmatprep.subr.bf16.mxu0 0
        %659 = vmatpush1.bf16.msra.mxu0 0
        %660 = vmatprep.subr.bf16.mxu0 0
        %661 = vmatpush1.bf16.msra.mxu0 0
        %662 = vmatprep.subr.bf16.mxu0 0
        %663 = vmatpush1.bf16.msra.mxu0 0
        %664 = vmatprep.subr.bf16.mxu0 0
        %665 = vmatpush1.bf16.msra.mxu0 0
        %666 = vmatprep.subr.bf16.mxu0 0
        %667 = vmatpush1.bf16.msra.mxu0 0
        %668 = vmatprep.subr.bf16.mxu0 0
        %669 = vmatpush1.bf16.msra.mxu0 0
        %670 = vmatprep.subr.bf16.mxu0 0
        %671 = vmatpush1.bf16.msra.mxu0 0
        %672 = vmatprep.subr.bf16.mxu0 0
        %673 = vmatpush1.bf16.msra.mxu0 0
        %674 = vmatprep.subr.bf16.mxu0 0
        %675 = vmatpush1.bf16.msra.mxu0 0
        %676 = vmatprep.subr.bf16.mxu0 0
        %677 = vmatpush1.bf16.msra.mxu0 0
        %678 = vmatprep.subr.bf16.mxu0 0
        %679 = vmatpush1.bf16.msra.mxu0 0
        %680 = vmatprep.subr.bf16.mxu0 0
        %681 = vmatpush1.bf16.msra.mxu0 0
        %682 = vmatprep.subr.bf16.mxu0 0
        %683 = vmatpush1.bf16.msra.mxu0 0
        %684 = vmatprep.subr.bf16.mxu0 0
        %685 = vmatpush1.bf16.msra.mxu0 0
        %686 = vmatprep.mubr.bf16.mxu0 0
        %687 = vmatmul.mubr.bf16.gmra.mrb[0].mxu0 %v649
        %v688 = vpop.f32.mrb[0].mxu0
        %v689 = vadd.f32 %v635, %v688
        %v690 = vpop.f32.mrb[0].mxu0
        %v691 = vpop.f32.mrb[0].mxu0
        %v692 = vadd.f32 %v635, %v691
        %v693 = vpop.f32.mrb[0].mxu0
        %694 = vmatprep.mubr.bf16.mxu0 0
        %695 = vmatmul.mubr.bf16.gmra.mrb[0].mxu0 %v652
        %v696 = vpop.f32.mrb[0].mxu0
        %v697 = vadd.f32 %v635, %v696
        %v698 = vpop.f32.mrb[0].mxu0
        %v699 = vpop.f32.mrb[0].mxu0
        %v700 = vadd.f32 %v635, %v699
        %v701 = vpop.f32.mrb[0].mxu0
        %702 = vdwg.mxu0
        %v703 = vpack.c.bf16 %v608, %v608
        %v704 = vpack.c.bf16 %v609, %v609
        %v705 = vpack.c.bf16 %v610, %v610
        %v706 = vpack.c.bf16 %v611, %v611
        %v707 = vpack.c.bf16 %v689, %v689
        %v708 = vpack.c.bf16 %v692, %v692
        %v709 = vpack.c.bf16 %v697, %v697
        %v710 = vpack.c.bf16 %v700, %v700
        %v711 = vpack.c.bf16 %v620, %v620
        %v712 = vpack.c.bf16 %v621, %v621
        %v713 = vpack.c.bf16 %v622, %v622
        %v714 = vpack.c.bf16 %v623, %v623
        %v715 = vlaneseq
        %v716 = vshrl.u32 %v715, 7
        %v717 = vlaneseq
        %v718 = vand.u32 %v717, 127
        %vm719 = vcmp.le.s32.totalorder %v718, %v716
        %vm720 = vcmask 130048
        %v722 = vsel %vm720, %v703, 0
        %v725 = vsel %vm720, %v707, 0
        %727 = vmatprep.subr.bf16.mxu0 0
        %728 = vmatpush1.bf16.xpose.msra.mxu0 %v725
        %729 = vmatprep.subr.bf16.mxu0 0
        %730 = vmatpush1.bf16.xpose.msra.mxu0 0
        %731 = vmatprep.subr.bf16.mxu0 0
        %732 = vmatpush1.bf16.xpose.msra.mxu0 0
        %733 = vmatprep.subr.bf16.mxu0 0
        %734 = vmatpush1.bf16.xpose.msra.mxu0 0
        %735 = vmatprep.subr.bf16.mxu0 0
        %736 = vmatpush1.bf16.xpose.msra.mxu0 0
        %737 = vmatprep.subr.bf16.mxu0 0
        %738 = vmatpush1.bf16.xpose.msra.mxu0 0
        %739 = vmatprep.subr.bf16.mxu0 0
        %740 = vmatpush1.bf16.xpose.msra.mxu0 0
        %741 = vmatprep.subr.bf16.mxu0 0
        %742 = vmatpush1.bf16.xpose.msra.mxu0 0
        %743 = vmatprep.subr.bf16.mxu0 0
        %744 = vmatpush1.bf16.xpose.msra.mxu0 0
        %745 = vmatprep.subr.bf16.mxu0 0
        %746 = vmatpush1.bf16.xpose.msra.mxu0 0
        %747 = vmatprep.subr.bf16.mxu0 0
        %748 = vmatpush1.bf16.xpose.msra.mxu0 0
        %749 = vmatprep.subr.bf16.mxu0 0
        %750 = vmatpush1.bf16.xpose.msra.mxu0 0
        %751 = vmatprep.subr.bf16.mxu0 0
        %752 = vmatpush1.bf16.xpose.msra.mxu0 0
        %753 = vmatprep.subr.bf16.mxu0 0
        %754 = vmatpush1.bf16.xpose.msra.mxu0 0
        %755 = vmatprep.subr.bf16.mxu0 0
        %756 = vmatpush1.bf16.xpose.msra.mxu0 0
        %757 = vmatprep.subr.bf16.mxu0 0
        %758 = vmatpush1.bf16.xpose.msra.mxu0 0
        %759 = vmatprep.mubr.bf16.mxu0 0
        %760 = vmatmul.mubr.bf16.gmra.mrb[0].mxu0 %v722
        %v761 = vpop.f32.mrb[0].mxu0
        %v762 = vadd.f32 0.0, %v761
        %v763 = vpop.f32.mrb[0].mxu0
        %v764 = vpop.f32.mrb[0].mxu0
        %v765 = vpop.f32.mrb[0].mxu0
        %766 = vdwg.mxu0
        %v768 = vsel %vm720, %v704, 0
        %v771 = vsel %vm720, %v708, 0
        %773 = vmatprep.subr.bf16.mxu0 0
        %774 = vmatpush1.bf16.xpose.msra.mxu0 %v771
        %775 = vmatprep.subr.bf16.mxu0 0
        %776 = vmatpush1.bf16.xpose.msra.mxu0 0
        %777 = vmatprep.subr.bf16.mxu0 0
        %778 = vmatpush1.bf16.xpose.msra.mxu0 0
        %779 = vmatprep.subr.bf16.mxu0 0
        %780 = vmatpush1.bf16.xpose.msra.mxu0 0
        %781 = vmatprep.subr.bf16.mxu0 0
        %782 = vmatpush1.bf16.xpose.msra.mxu0 0
        %783 = vmatprep.subr.bf16.mxu0 0
        %784 = vmatpush1.bf16.xpose.msra.mxu0 0
        %785 = vmatprep.subr.bf16.mxu0 0
        %786 = vmatpush1.bf16.xpose.msra.mxu0 0
        %787 = vmatprep.subr.bf16.mxu0 0
        %788 = vmatpush1.bf16.xpose.msra.mxu0 0
        %789 = vmatprep.subr.bf16.mxu0 0
        %790 = vmatpush1.bf16.xpose.msra.mxu0 0
        %791 = vmatprep.subr.bf16.mxu0 0
        %792 = vmatpush1.bf16.xpose.msra.mxu0 0
        %793 = vmatprep.subr.bf16.mxu0 0
        %794 = vmatpush1.bf16.xpose.msra.mxu0 0
        %795 = vmatprep.subr.bf16.mxu0 0
        %796 = vmatpush1.bf16.xpose.msra.mxu0 0
        %797 = vmatprep.subr.bf16.mxu0 0
        %798 = vmatpush1.bf16.xpose.msra.mxu0 0
        %799 = vmatprep.subr.bf16.mxu0 0
        %800 = vmatpush1.bf16.xpose.msra.mxu0 0
        %801 = vmatprep.subr.bf16.mxu0 0
        %802 = vmatpush1.bf16.xpose.msra.mxu0 0
        %803 = vmatprep.subr.bf16.mxu0 0
        %804 = vmatpush1.bf16.xpose.msra.mxu0 0
        %805 = vmatprep.mubr.bf16.mxu0 0
        %806 = vmatmul.mubr.bf16.gmra.mrb[0].mxu0 %v768
        %v807 = vpop.f32.mrb[0].mxu0
        %v808 = vadd.f32 0.0, %v807
        %v809 = vpop.f32.mrb[0].mxu0
        %v810 = vpop.f32.mrb[0].mxu0
        %v811 = vpop.f32.mrb[0].mxu0
        %812 = vdwg.mxu0
        %v814 = vsel %vm720, %v705, 0
        %v817 = vsel %vm720, %v709, 0
        %819 = vmatprep.subr.bf16.mxu0 0
        %820 = vmatpush1.bf16.xpose.msra.mxu0 %v817
        %821 = vmatprep.subr.bf16.mxu0 0
        %822 = vmatpush1.bf16.xpose.msra.mxu0 0
        %823 = vmatprep.subr.bf16.mxu0 0
        %824 = vmatpush1.bf16.xpose.msra.mxu0 0
        %825 = vmatprep.subr.bf16.mxu0 0
        %826 = vmatpush1.bf16.xpose.msra.mxu0 0
        %827 = vmatprep.subr.bf16.mxu0 0
        %828 = vmatpush1.bf16.xpose.msra.mxu0 0
        %829 = vmatprep.subr.bf16.mxu0 0
        %830 = vmatpush1.bf16.xpose.msra.mxu0 0
        %831 = vmatprep.subr.bf16.mxu0 0
        %832 = vmatpush1.bf16.xpose.msra.mxu0 0
        %833 = vmatprep.subr.bf16.mxu0 0
        %834 = vmatpush1.bf16.xpose.msra.mxu0 0
        %835 = vmatprep.subr.bf16.mxu0 0
        %836 = vmatpush1.bf16.xpose.msra.mxu0 0
        %837 = vmatprep.subr.bf16.mxu0 0
        %838 = vmatpush1.bf16.xpose.msra.mxu0 0
        %839 = vmatprep.subr.bf16.mxu0 0
        %840 = vmatpush1.bf16.xpose.msra.mxu0 0
        %841 = vmatprep.subr.bf16.mxu0 0
        %842 = vmatpush1.bf16.xpose.msra.mxu0 0
        %843 = vmatprep.subr.bf16.mxu0 0
        %844 = vmatpush1.bf16.xpose.msra.mxu0 0
        %845 = vmatprep.subr.bf16.mxu0 0
        %846 = vmatpush1.bf16.xpose.msra.mxu0 0
        %847 = vmatprep.subr.bf16.mxu0 0
        %848 = vmatpush1.bf16.xpose.msra.mxu0 0
        %849 = vmatprep.subr.bf16.mxu0 0
        %850 = vmatpush1.bf16.xpose.msra.mxu0 0
        %851 = vmatprep.mubr.bf16.mxu0 0
        %852 = vmatmul.mubr.bf16.gmra.mrb[0].mxu0 %v814
        %v853 = vpop.f32.mrb[0].mxu0
        %v854 = vadd.f32 0.0, %v853
        %v855 = vpop.f32.mrb[0].mxu0
        %v856 = vpop.f32.mrb[0].mxu0
        %v857 = vpop.f32.mrb[0].mxu0
        %858 = vdwg.mxu0
        %v860 = vsel %vm720, %v706, 0
        %v863 = vsel %vm720, %v710, 0
        %865 = vmatprep.subr.bf16.mxu0 0
        %866 = vmatpush1.bf16.xpose.msra.mxu0 %v863
        %867 = vmatprep.subr.bf16.mxu0 0
        %868 = vmatpush1.bf16.xpose.msra.mxu0 0
        %869 = vmatprep.subr.bf16.mxu0 0
        %870 = vmatpush1.bf16.xpose.msra.mxu0 0
        %871 = vmatprep.subr.bf16.mxu0 0
        %872 = vmatpush1.bf16.xpose.msra.mxu0 0
        %873 = vmatprep.subr.bf16.mxu0 0
        %874 = vmatpush1.bf16.xpose.msra.mxu0 0
        %875 = vmatprep.subr.bf16.mxu0 0
        %876 = vmatpush1.bf16.xpose.msra.mxu0 0
        %877 = vmatprep.subr.bf16.mxu0 0
        %878 = vmatpush1.bf16.xpose.msra.mxu0 0
        %879 = vmatprep.subr.bf16.mxu0 0
        %880 = vmatpush1.bf16.xpose.msra.mxu0 0
        %881 = vmatprep.subr.bf16.mxu0 0
        %882 = vmatpush1.bf16.xpose.msra.mxu0 0
        %883 = vmatprep.subr.bf16.mxu0 0
        %884 = vmatpush1.bf16.xpose.msra.mxu0 0
        %885 = vmatprep.subr.bf16.mxu0 0
        %886 = vmatpush1.bf16.xpose.msra.mxu0 0
        %887 = vmatprep.subr.bf16.mxu0 0
        %888 = vmatpush1.bf16.xpose.msra.mxu0 0
        %889 = vmatprep.subr.bf16.mxu0 0
        %890 = vmatpush1.bf16.xpose.msra.mxu0 0
        %891 = vmatprep.subr.bf16.mxu0 0
        %892 = vmatpush1.bf16.xpose.msra.mxu0 0
        %893 = vmatprep.subr.bf16.mxu0 0
        %894 = vmatpush1.bf16.xpose.msra.mxu0 0
        %895 = vmatprep.subr.bf16.mxu0 0
        %896 = vmatpush1.bf16.xpose.msra.mxu0 0
        %897 = vmatprep.mubr.bf16.mxu0 0
        %898 = vmatmul.mubr.bf16.gmra.mrb[0].mxu0 %v860
        %v899 = vpop.f32.mrb[0].mxu0
        %v900 = vadd.f32 0.0, %v899
        %v901 = vpop.f32.mrb[0].mxu0
        %v902 = vpop.f32.mrb[0].mxu0
        %v903 = vpop.f32.mrb[0].mxu0
        %904 = vdwg.mxu0
        %v905 = vsel %vm719, 1, 0
        %vm906 = vcmp.eq.s32.totalorder %v905, 1
        %v907 = vsel %vm906, %v762, -1e+30
        %v908 = vsel %vm906, %v808, -1e+30
        %v909 = vsel %vm906, %v854, -1e+30
        %v910 = vsel %vm906, %v900, -1e+30
        %vm911 = vcmask 64512
        %v912 = vsel %vm911, %v907, -inf
        %913 = vmax.xlane.f32.xlu0 %v912
        %v914 = vpop.xlane.xlu0 %913
        %v915 = vsel %vm911, %v908, -inf
        %916 = vmax.xlane.f32.xlu0 %v915
        %v917 = vpop.xlane.xlu0 %916
        %v918 = vsel %vm911, %v909, -inf
        %919 = vmax.xlane.f32.xlu0 %v918
        %v920 = vpop.xlane.xlu0 %919
        %v921 = vsel %vm911, %v910, -inf
        %922 = vmax.xlane.f32.xlu0 %v921
        %v923 = vpop.xlane.xlu0 %922
        %v924 = vsub.f32 %v907, %v914
        %v925 = vsub.f32 %v908, %v917
        %v926 = vsub.f32 %v909, %v920
        %v927 = vsub.f32 %v910, %v923
        %v928 = vmul.f32 %v924, 1.442695
        %v929 = vpow.pop %v928
        %v930 = vmul.f32 %v925, 1.442695
        %v931 = vpow.pop %v930
        %v932 = vmul.f32 %v926, 1.442695
        %v933 = vpow.pop %v932
        %v934 = vmul.f32 %v927, 1.442695
        %v935 = vpow.pop %v934
        %v936 = vsel %vm911, %v929, 0.0
        %937 = vadd.xlane.f32.xlu0 %v936
        %v938 = vpop.xlane.xlu0 %937
        %v939 = vsel %vm911, %v931, 0.0
        %940 = vadd.xlane.f32.xlu0 %v939
        %v941 = vpop.xlane.xlu0 %940
        %v942 = vsel %vm911, %v933, 0.0
        %943 = vadd.xlane.f32.xlu0 %v942
        %v944 = vpop.xlane.xlu0 %943
        %v945 = vsel %vm911, %v935, 0.0
        %946 = vadd.xlane.f32.xlu0 %v945
        %v947 = vpop.xlane.xlu0 %946
        %v948 = vrcp.pop %v938
        %v949 = vrcp.pop %v941
        %v950 = vrcp.pop %v944
        %v951 = vrcp.pop %v947
        %v952 = vmul.f32 %v929, %v948
        %v953 = vmul.f32 %v931, %v949
        %v954 = vmul.f32 %v933, %v950
        %v955 = vmul.f32 %v935, %v951
        %v956 = vpack.c.bf16 %v952, %v952
        %v957 = vpack.c.bf16 %v953, %v953
        %v958 = vpack.c.bf16 %v954, %v954
        %v959 = vpack.c.bf16 %v955, %v955
        %961 = vrot.lane.b32.xlu0 %v711, 96
        %v962 = vpop.permute.xlu0 %961
        %v964 = vsel %vm911, %v956, 0
        %vm966 = vcmask 1043456
        %v968 = vsel %vm966, %v962, 0
        %970 = vmatprep.subr.bf16.mxu0 0
        %971 = vmatpush1.bf16.msra.mxu0 %v968
        %972 = vmatprep.subr.bf16.mxu0 0
        %973 = vmatpush1.bf16.msra.mxu0 0
        %974 = vmatprep.subr.bf16.mxu0 0
        %975 = vmatpush1.bf16.msra.mxu0 0
        %976 = vmatprep.subr.bf16.mxu0 0
        %977 = vmatpush1.bf16.msra.mxu0 0
        %978 = vmatprep.subr.bf16.mxu0 0
        %979 = vmatpush1.bf16.msra.mxu0 0
        %980 = vmatprep.subr.bf16.mxu0 0
        %981 = vmatpush1.bf16.msra.mxu0 0
        %982 = vmatprep.subr.bf16.mxu0 0
        %983 = vmatpush1.bf16.msra.mxu0 0
        %984 = vmatprep.subr.bf16.mxu0 0
        %985 = vmatpush1.bf16.msra.mxu0 0
        %986 = vmatprep.subr.bf16.mxu0 0
        %987 = vmatpush1.bf16.msra.mxu0 0
        %988 = vmatprep.subr.bf16.mxu0 0
        %989 = vmatpush1.bf16.msra.mxu0 0
        %990 = vmatprep.subr.bf16.mxu0 0
        %991 = vmatpush1.bf16.msra.mxu0 0
        %992 = vmatprep.subr.bf16.mxu0 0
        %993 = vmatpush1.bf16.msra.mxu0 0
        %994 = vmatprep.subr.bf16.mxu0 0
        %995 = vmatpush1.bf16.msra.mxu0 0
        %996 = vmatprep.subr.bf16.mxu0 0
        %997 = vmatpush1.bf16.msra.mxu0 0
        %998 = vmatprep.subr.bf16.mxu0 0
        %999 = vmatpush1.bf16.msra.mxu0 0
        %1000 = vmatprep.subr.bf16.mxu0 0
        %1001 = vmatpush1.bf16.msra.mxu0 0
        %1002 = vmatprep.mubr.bf16.mxu0 0
        %1003 = vmatmul.mubr.bf16.gmra.mrb[0].mxu0 %v964
        %v1004 = vpop.f32.mrb[0].mxu0
        %v1005 = vadd.f32 0.0, %v1004
        %v1006 = vpop.f32.mrb[0].mxu0
        %v1007 = vpop.f32.mrb[0].mxu0
        %v1008 = vpop.f32.mrb[0].mxu0
        %1009 = vdwg.mxu0
        %1011 = vrot.lane.b32.xlu0 %v712, 96
        %v1012 = vpop.permute.xlu0 %1011
        %v1014 = vsel %vm911, %v957, 0
        %v1017 = vsel %vm966, %v1012, 0
        %1019 = vmatprep.subr.bf16.mxu0 0
        %1020 = vmatpush1.bf16.msra.mxu0 %v1017
        %1021 = vmatprep.subr.bf16.mxu0 0
        %1022 = vmatpush1.bf16.msra.mxu0 0
        %1023 = vmatprep.subr.bf16.mxu0 0
        %1024 = vmatpush1.bf16.msra.mxu0 0
        %1025 = vmatprep.subr.bf16.mxu0 0
        %1026 = vmatpush1.bf16.msra.mxu0 0
        %1027 = vmatprep.subr.bf16.mxu0 0
        %1028 = vmatpush1.bf16.msra.mxu0 0
        %1029 = vmatprep.subr.bf16.mxu0 0
        %1030 = vmatpush1.bf16.msra.mxu0 0
        %1031 = vmatprep.subr.bf16.mxu0 0
        %1032 = vmatpush1.bf16.msra.mxu0 0
        %1033 = vmatprep.subr.bf16.mxu0 0
        %1034 = vmatpush1.bf16.msra.mxu0 0
        %1035 = vmatprep.subr.bf16.mxu0 0
        %1036 = vmatpush1.bf16.msra.mxu0 0
        %1037 = vmatprep.subr.bf16.mxu0 0
        %1038 = vmatpush1.bf16.msra.mxu0 0
        %1039 = vmatprep.subr.bf16.mxu0 0
        %1040 = vmatpush1.bf16.msra.mxu0 0
        %1041 = vmatprep.subr.bf16.mxu0 0
        %1042 = vmatpush1.bf16.msra.mxu0 0
        %1043 = vmatprep.subr.bf16.mxu0 0
        %1044 = vmatpush1.bf16.msra.mxu0 0
        %1045 = vmatprep.subr.bf16.mxu0 0
        %1046 = vmatpush1.bf16.msra.mxu0 0
        %1047 = vmatprep.subr.bf16.mxu0 0
        %1048 = vmatpush1.bf16.msra.mxu0 0
        %1049 = vmatprep.subr.bf16.mxu0 0
        %1050 = vmatpush1.bf16.msra.mxu0 0
        %1051 = vmatprep.mubr.bf16.mxu0 0
        %1052 = vmatmul.mubr.bf16.gmra.mrb[0].mxu0 %v1014
        %v1053 = vpop.f32.mrb[0].mxu0
        %v1054 = vadd.f32 0.0, %v1053
        %v1055 = vpop.f32.mrb[0].mxu0
        %v1056 = vpop.f32.mrb[0].mxu0
        %v1057 = vpop.f32.mrb[0].mxu0
        %1058 = vdwg.mxu0
        %1060 = vrot.lane.b32.xlu0 %v713, 96
        %v1061 = vpop.permute.xlu0 %1060
        %v1063 = vsel %vm911, %v958, 0
        %v1066 = vsel %vm966, %v1061, 0
        %1068 = vmatprep.subr.bf16.mxu0 0
        %1069 = vmatpush1.bf16.msra.mxu0 %v1066
        %1070 = vmatprep.subr.bf16.mxu0 0
        %1071 = vmatpush1.bf16.msra.mxu0 0
        %1072 = vmatprep.subr.bf16.mxu0 0
        %1073 = vmatpush1.bf16.msra.mxu0 0
        %1074 = vmatprep.subr.bf16.mxu0 0
        %1075 = vmatpush1.bf16.msra.mxu0 0
        %1076 = vmatprep.subr.bf16.mxu0 0
        %1077 = vmatpush1.bf16.msra.mxu0 0
        %1078 = vmatprep.subr.bf16.mxu0 0
        %1079 = vmatpush1.bf16.msra.mxu0 0
        %1080 = vmatprep.subr.bf16.mxu0 0
        %1081 = vmatpush1.bf16.msra.mxu0 0
        %1082 = vmatprep.subr.bf16.mxu0 0
        %1083 = vmatpush1.bf16.msra.mxu0 0
        %1084 = vmatprep.subr.bf16.mxu0 0
        %1085 = vmatpush1.bf16.msra.mxu0 0
        %1086 = vmatprep.subr.bf16.mxu0 0
        %1087 = vmatpush1.bf16.msra.mxu0 0
        %1088 = vmatprep.subr.bf16.mxu0 0
        %1089 = vmatpush1.bf16.msra.mxu0 0
        %1090 = vmatprep.subr.bf16.mxu0 0
        %1091 = vmatpush1.bf16.msra.mxu0 0
        %1092 = vmatprep.subr.bf16.mxu0 0
        %1093 = vmatpush1.bf16.msra.mxu0 0
        %1094 = vmatprep.subr.bf16.mxu0 0
        %1095 = vmatpush1.bf16.msra.mxu0 0
        %1096 = vmatprep.subr.bf16.mxu0 0
        %1097 = vmatpush1.bf16.msra.mxu0 0
        %1098 = vmatprep.subr.bf16.mxu0 0
        %1099 = vmatpush1.bf16.msra.mxu0 0
        %1100 = vmatprep.mubr.bf16.mxu0 0
        %1101 = vmatmul.mubr.bf16.gmra.mrb[0].mxu0 %v1063
        %v1102 = vpop.f32.mrb[0].mxu0
        %v1103 = vadd.f32 0.0, %v1102
        %v1104 = vpop.f32.mrb[0].mxu0
        %v1105 = vpop.f32.mrb[0].mxu0
        %v1106 = vpop.f32.mrb[0].mxu0
        %1107 = vdwg.mxu0
        %1109 = vrot.lane.b32.xlu0 %v714, 96
        %v1110 = vpop.permute.xlu0 %1109
        %v1112 = vsel %vm911, %v959, 0
        %v1115 = vsel %vm966, %v1110, 0
        %1117 = vmatprep.subr.bf16.mxu0 0
        %1118 = vmatpush1.bf16.msra.mxu0 %v1115
        %1119 = vmatprep.subr.bf16.mxu0 0
        %1120 = vmatpush1.bf16.msra.mxu0 0
        %1121 = vmatprep.subr.bf16.mxu0 0
        %1122 = vmatpush1.bf16.msra.mxu0 0
        %1123 = vmatprep.subr.bf16.mxu0 0
        %1124 = vmatpush1.bf16.msra.mxu0 0
        %1125 = vmatprep.subr.bf16.mxu0 0
        %1126 = vmatpush1.bf16.msra.mxu0 0
        %1127 = vmatprep.subr.bf16.mxu0 0
        %1128 = vmatpush1.bf16.msra.mxu0 0
        %1129 = vmatprep.subr.bf16.mxu0 0
        %1130 = vmatpush1.bf16.msra.mxu0 0
        %1131 = vmatprep.subr.bf16.mxu0 0
        %1132 = vmatpush1.bf16.msra.mxu0 0
        %1133 = vmatprep.subr.bf16.mxu0 0
        %1134 = vmatpush1.bf16.msra.mxu0 0
        %1135 = vmatprep.subr.bf16.mxu0 0
        %1136 = vmatpush1.bf16.msra.mxu0 0
        %1137 = vmatprep.subr.bf16.mxu0 0
        %1138 = vmatpush1.bf16.msra.mxu0 0
        %1139 = vmatprep.subr.bf16.mxu0 0
        %1140 = vmatpush1.bf16.msra.mxu0 0
        %1141 = vmatprep.subr.bf16.mxu0 0
        %1142 = vmatpush1.bf16.msra.mxu0 0
        %1143 = vmatprep.subr.bf16.mxu0 0
        %1144 = vmatpush1.bf16.msra.mxu0 0
        %1145 = vmatprep.subr.bf16.mxu0 0
        %1146 = vmatpush1.bf16.msra.mxu0 0
        %1147 = vmatprep.subr.bf16.mxu0 0
        %1148 = vmatpush1.bf16.msra.mxu0 0
        %1149 = vmatprep.mubr.bf16.mxu0 0
        %1150 = vmatmul.mubr.bf16.gmra.mrb[0].mxu0 %v1112
        %v1151 = vpop.f32.mrb[0].mxu0
        %v1152 = vadd.f32 0.0, %v1151
        %v1153 = vpop.f32.mrb[0].mxu0
        %v1154 = vpop.f32.mrb[0].mxu0
        %v1155 = vpop.f32.mrb[0].mxu0
        %1156 = vdwg.mxu0
        %1158 = vrot.lane.b32.xlu0 %v703, 112
        %v1159 = vpop.permute.xlu0 %1158
        %1161 = vrot.lane.b32.xlu0 %v707, 112
        %v1162 = vpop.permute.xlu0 %1161
        %v1164 = vsel %vm720, %v1159, 0
        %v1167 = vsel %vm720, %v1162, 0
        %1169 = vmatprep.subr.bf16.mxu0 0
        %1170 = vmatpush1.bf16.xpose.msra.mxu0 %v1167
        %1171 = vmatprep.subr.bf16.mxu0 0
        %1172 = vmatpush1.bf16.xpose.msra.mxu0 0
        %1173 = vmatprep.subr.bf16.mxu0 0
        %1174 = vmatpush1.bf16.xpose.msra.mxu0 0
        %1175 = vmatprep.subr.bf16.mxu0 0
        %1176 = vmatpush1.bf16.xpose.msra.mxu0 0
        %1177 = vmatprep.subr.bf16.mxu0 0
        %1178 = vmatpush1.bf16.xpose.msra.mxu0 0
        %1179 = vmatprep.subr.bf16.mxu0 0
        %1180 = vmatpush1.bf16.xpose.msra.mxu0 0
        %1181 = vmatprep.subr.bf16.mxu0 0
        %1182 = vmatpush1.bf16.xpose.msra.mxu0 0
        %1183 = vmatprep.subr.bf16.mxu0 0
        %1184 = vmatpush1.bf16.xpose.msra.mxu0 0
        %1185 = vmatprep.subr.bf16.mxu0 0
        %1186 = vmatpush1.bf16.xpose.msra.mxu0 0
        %1187 = vmatprep.subr.bf16.mxu0 0
        %1188 = vmatpush1.bf16.xpose.msra.mxu0 0
        %1189 = vmatprep.subr.bf16.mxu0 0
        %1190 = vmatpush1.bf16.xpose.msra.mxu0 0
        %1191 = vmatprep.subr.bf16.mxu0 0
        %1192 = vmatpush1.bf16.xpose.msra.mxu0 0
        %1193 = vmatprep.subr.bf16.mxu0 0
        %1194 = vmatpush1.bf16.xpose.msra.mxu0 0
        %1195 = vmatprep.subr.bf16.mxu0 0
        %1196 = vmatpush1.bf16.xpose.msra.mxu0 0
        %1197 = vmatprep.subr.bf16.mxu0 0
        %1198 = vmatpush1.bf16.xpose.msra.mxu0 0
        %1199 = vmatprep.subr.bf16.mxu0 0
        %1200 = vmatpush1.bf16.xpose.msra.mxu0 0
        %1201 = vmatprep.mubr.bf16.mxu0 0
        %1202 = vmatmul.mubr.bf16.gmra.mrb[0].mxu0 %v1164
        %v1203 = vpop.f32.mrb[0].mxu0
        %v1204 = vadd.f32 0.0, %v1203
        %v1205 = vpop.f32.mrb[0].mxu0
        %v1206 = vpop.f32.mrb[0].mxu0
        %v1207 = vpop.f32.mrb[0].mxu0
        %1208 = vdwg.mxu0
        %1210 = vrot.lane.b32.xlu0 %v704, 112
        %v1211 = vpop.permute.xlu0 %1210
        %1213 = vrot.lane.b32.xlu0 %v708, 112
        %v1214 = vpop.permute.xlu0 %1213
        %v1216 = vsel %vm720, %v1211, 0
        %v1219 = vsel %vm720, %v1214, 0
        %1221 = vmatprep.subr.bf16.mxu0 0
        %1222 = vmatpush1.bf16.xpose.msra.mxu0 %v1219
        %1223 = vmatprep.subr.bf16.mxu0 0
        %1224 = vmatpush1.bf16.xpose.msra.mxu0 0
        %1225 = vmatprep.subr.bf16.mxu0 0
        %1226 = vmatpush1.bf16.xpose.msra.mxu0 0
        %1227 = vmatprep.subr.bf16.mxu0 0
        %1228 = vmatpush1.bf16.xpose.msra.mxu0 0
        %1229 = vmatprep.subr.bf16.mxu0 0
        %1230 = vmatpush1.bf16.xpose.msra.mxu0 0
        %1231 = vmatprep.subr.bf16.mxu0 0
        %1232 = vmatpush1.bf16.xpose.msra.mxu0 0
        %1233 = vmatprep.subr.bf16.mxu0 0
        %1234 = vmatpush1.bf16.xpose.msra.mxu0 0
        %1235 = vmatprep.subr.bf16.mxu0 0
        %1236 = vmatpush1.bf16.xpose.msra.mxu0 0
        %1237 = vmatprep.subr.bf16.mxu0 0
        %1238 = vmatpush1.bf16.xpose.msra.mxu0 0
        %1239 = vmatprep.subr.bf16.mxu0 0
        %1240 = vmatpush1.bf16.xpose.msra.mxu0 0
        %1241 = vmatprep.subr.bf16.mxu0 0
        %1242 = vmatpush1.bf16.xpose.msra.mxu0 0
        %1243 = vmatprep.subr.bf16.mxu0 0
        %1244 = vmatpush1.bf16.xpose.msra.mxu0 0
        %1245 = vmatprep.subr.bf16.mxu0 0
        %1246 = vmatpush1.bf16.xpose.msra.mxu0 0
        %1247 = vmatprep.subr.bf16.mxu0 0
        %1248 = vmatpush1.bf16.xpose.msra.mxu0 0
        %1249 = vmatprep.subr.bf16.mxu0 0
        %1250 = vmatpush1.bf16.xpose.msra.mxu0 0
        %1251 = vmatprep.subr.bf16.mxu0 0
        %1252 = vmatpush1.bf16.xpose.msra.mxu0 0
        %1253 = vmatprep.mubr.bf16.mxu0 0
        %1254 = vmatmul.mubr.bf16.gmra.mrb[0].mxu0 %v1216
        %v1255 = vpop.f32.mrb[0].mxu0
        %v1256 = vadd.f32 0.0, %v1255
        %v1257 = vpop.f32.mrb[0].mxu0
        %v1258 = vpop.f32.mrb[0].mxu0
        %v1259 = vpop.f32.mrb[0].mxu0
        %1260 = vdwg.mxu0
        %1262 = vrot.lane.b32.xlu0 %v705, 112
        %v1263 = vpop.permute.xlu0 %1262
        %1265 = vrot.lane.b32.xlu0 %v709, 112
        %v1266 = vpop.permute.xlu0 %1265
        %v1268 = vsel %vm720, %v1263, 0
        %v1271 = vsel %vm720, %v1266, 0
        %1273 = vmatprep.subr.bf16.mxu0 0
        %1274 = vmatpush1.bf16.xpose.msra.mxu0 %v1271
        %1275 = vmatprep.subr.bf16.mxu0 0
        %1276 = vmatpush1.bf16.xpose.msra.mxu0 0
        %1277 = vmatprep.subr.bf16.mxu0 0
        %1278 = vmatpush1.bf16.xpose.msra.mxu0 0
        %1279 = vmatprep.subr.bf16.mxu0 0
        %1280 = vmatpush1.bf16.xpose.msra.mxu0 0
        %1281 = vmatprep.subr.bf16.mxu0 0
        %1282 = vmatpush1.bf16.xpose.msra.mxu0 0
        %1283 = vmatprep.subr.bf16.mxu0 0
        %1284 = vmatpush1.bf16.xpose.msra.mxu0 0
        %1285 = vmatprep.subr.bf16.mxu0 0
        %1286 = vmatpush1.bf16.xpose.msra.mxu0 0
        %1287 = vmatprep.subr.bf16.mxu0 0
        %1288 = vmatpush1.bf16.xpose.msra.mxu0 0
        %1289 = vmatprep.subr.bf16.mxu0 0
        %1290 = vmatpush1.bf16.xpose.msra.mxu0 0
        %1291 = vmatprep.subr.bf16.mxu0 0
        %1292 = vmatpush1.bf16.xpose.msra.mxu0 0
        %1293 = vmatprep.subr.bf16.mxu0 0
        %1294 = vmatpush1.bf16.xpose.msra.mxu0 0
        %1295 = vmatprep.subr.bf16.mxu0 0
        %1296 = vmatpush1.bf16.xpose.msra.mxu0 0
        %1297 = vmatprep.subr.bf16.mxu0 0
        %1298 = vmatpush1.bf16.xpose.msra.mxu0 0
        %1299 = vmatprep.subr.bf16.mxu0 0
        %1300 = vmatpush1.bf16.xpose.msra.mxu0 0
        %1301 = vmatprep.subr.bf16.mxu0 0
        %1302 = vmatpush1.bf16.xpose.msra.mxu0 0
        %1303 = vmatprep.subr.bf16.mxu0 0
        %1304 = vmatpush1.bf16.xpose.msra.mxu0 0
        %1305 = vmatprep.mubr.bf16.mxu0 0
        %1306 = vmatmul.mubr.bf16.gmra.mrb[0].mxu0 %v1268
        %v1307 = vpop.f32.mrb[0].mxu0
        %v1308 = vadd.f32 0.0, %v1307
        %v1309 = vpop.f32.mrb[0].mxu0
        %v1310 = vpop.f32.mrb[0].mxu0
        %v1311 = vpop.f32.mrb[0].mxu0
        %1312 = vdwg.mxu0
        %1314 = vrot.lane.b32.xlu0 %v706, 112
        %v1315 = vpop.permute.xlu0 %1314
        %1317 = vrot.lane.b32.xlu0 %v710, 112
        %v1318 = vpop.permute.xlu0 %1317
        %v1320 = vsel %vm720, %v1315, 0
        %v1323 = vsel %vm720, %v1318, 0
        %1325 = vmatprep.subr.bf16.mxu0 0
        %1326 = vmatpush1.bf16.xpose.msra.mxu0 %v1323
        %1327 = vmatprep.subr.bf16.mxu0 0
        %1328 = vmatpush1.bf16.xpose.msra.mxu0 0
        %1329 = vmatprep.subr.bf16.mxu0 0
        %1330 = vmatpush1.bf16.xpose.msra.mxu0 0
        %1331 = vmatprep.subr.bf16.mxu0 0
        %1332 = vmatpush1.bf16.xpose.msra.mxu0 0
        %1333 = vmatprep.subr.bf16.mxu0 0
        %1334 = vmatpush1.bf16.xpose.msra.mxu0 0
        %1335 = vmatprep.subr.bf16.mxu0 0
        %1336 = vmatpush1.bf16.xpose.msra.mxu0 0
        %1337 = vmatprep.subr.bf16.mxu0 0
        %1338 = vmatpush1.bf16.xpose.msra.mxu0 0
        %1339 = vmatprep.subr.bf16.mxu0 0
        %1340 = vmatpush1.bf16.xpose.msra.mxu0 0
        %1341 = vmatprep.subr.bf16.mxu0 0
        %1342 = vmatpush1.bf16.xpose.msra.mxu0 0
        %1343 = vmatprep.subr.bf16.mxu0 0
        %1344 = vmatpush1.bf16.xpose.msra.mxu0 0
        %1345 = vmatprep.subr.bf16.mxu0 0
        %1346 = vmatpush1.bf16.xpose.msra.mxu0 0
        %1347 = vmatprep.subr.bf16.mxu0 0
        %1348 = vmatpush1.bf16.xpose.msra.mxu0 0
        %1349 = vmatprep.subr.bf16.mxu0 0
        %1350 = vmatpush1.bf16.xpose.msra.mxu0 0
        %1351 = vmatprep.subr.bf16.mxu0 0
        %1352 = vmatpush1.bf16.xpose.msra.mxu0 0
        %1353 = vmatprep.subr.bf16.mxu0 0
        %1354 = vmatpush1.bf16.xpose.msra.mxu0 0
        %1355 = vmatprep.subr.bf16.mxu0 0
        %1356 = vmatpush1.bf16.xpose.msra.mxu0 0
        %1357 = vmatprep.mubr.bf16.mxu0 0
        %1358 = vmatmul.mubr.bf16.gmra.mrb[0].mxu0 %v1320
        %v1359 = vpop.f32.mrb[0].mxu0
        %v1360 = vadd.f32 0.0, %v1359
        %v1361 = vpop.f32.mrb[0].mxu0
        %v1362 = vpop.f32.mrb[0].mxu0
        %v1363 = vpop.f32.mrb[0].mxu0
        %1364 = vdwg.mxu0
        %v1365 = vsel %vm906, %v1204, -1e+30
        %v1366 = vsel %vm906, %v1256, -1e+30
        %v1367 = vsel %vm906, %v1308, -1e+30
        %v1368 = vsel %vm906, %v1360, -1e+30
        %v1369 = vsel %vm911, %v1365, -inf
        %1370 = vmax.xlane.f32.xlu0 %v1369
        %v1371 = vpop.xlane.xlu0 %1370
        %v1372 = vsel %vm911, %v1366, -inf
        %1373 = vmax.xlane.f32.xlu0 %v1372
        %v1374 = vpop.xlane.xlu0 %1373
        %v1375 = vsel %vm911, %v1367, -inf
        %1376 = vmax.xlane.f32.xlu0 %v1375
        %v1377 = vpop.xlane.xlu0 %1376
        %v1378 = vsel %vm911, %v1368, -inf
        %1379 = vmax.xlane.f32.xlu0 %v1378
        %v1380 = vpop.xlane.xlu0 %1379
        %v1381 = vsub.f32 %v1365, %v1371
        %v1382 = vsub.f32 %v1366, %v1374
        %v1383 = vsub.f32 %v1367, %v1377
        %v1384 = vsub.f32 %v1368, %v1380
        %v1385 = vmul.f32 %v1381, 1.442695
        %v1386 = vpow.pop %v1385
        %v1387 = vmul.f32 %v1382, 1.442695
        %v1388 = vpow.pop %v1387
        %v1389 = vmul.f32 %v1383, 1.442695
        %v1390 = vpow.pop %v1389
        %v1391 = vmul.f32 %v1384, 1.442695
        %v1392 = vpow.pop %v1391
        %v1393 = vsel %vm911, %v1386, 0.0
        %1394 = vadd.xlane.f32.xlu0 %v1393
        %v1395 = vpop.xlane.xlu0 %1394
        %v1396 = vsel %vm911, %v1388, 0.0
        %1397 = vadd.xlane.f32.xlu0 %v1396
        %v1398 = vpop.xlane.xlu0 %1397
        %v1399 = vsel %vm911, %v1390, 0.0
        %1400 = vadd.xlane.f32.xlu0 %v1399
        %v1401 = vpop.xlane.xlu0 %1400
        %v1402 = vsel %vm911, %v1392, 0.0
        %1403 = vadd.xlane.f32.xlu0 %v1402
        %v1404 = vpop.xlane.xlu0 %1403
        %v1405 = vrcp.pop %v1395
        %v1406 = vrcp.pop %v1398
        %v1407 = vrcp.pop %v1401
        %v1408 = vrcp.pop %v1404
        %v1409 = vmul.f32 %v1386, %v1405
        %v1410 = vmul.f32 %v1388, %v1406
        %v1411 = vmul.f32 %v1390, %v1407
        %v1412 = vmul.f32 %v1392, %v1408
        %v1413 = vpack.c.bf16 %v1409, %v1409
        %v1414 = vpack.c.bf16 %v1410, %v1410
        %v1415 = vpack.c.bf16 %v1411, %v1411
        %v1416 = vpack.c.bf16 %v1412, %v1412
        %1417 = vrot.lane.b32.xlu0 %v711, 80
        %v1418 = vpop.permute.xlu0 %1417
        %v1420 = vsel %vm911, %v1413, 0
        %v1423 = vsel %vm966, %v1418, 0
        %1425 = vmatprep.subr.bf16.mxu0 0
        %1426 = vmatpush1.bf16.msra.mxu0 %v1423
        %1427 = vmatprep.subr.bf16.mxu0 0
        %1428 = vmatpush1.bf16.msra.mxu0 0
        %1429 = vmatprep.subr.bf16.mxu0 0
        %1430 = vmatpush1.bf16.msra.mxu0 0
        %1431 = vmatprep.subr.bf16.mxu0 0
        %1432 = vmatpush1.bf16.msra.mxu0 0
        %1433 = vmatprep.subr.bf16.mxu0 0
        %1434 = vmatpush1.bf16.msra.mxu0 0
        %1435 = vmatprep.subr.bf16.mxu0 0
        %1436 = vmatpush1.bf16.msra.mxu0 0
        %1437 = vmatprep.subr.bf16.mxu0 0
        %1438 = vmatpush1.bf16.msra.mxu0 0
        %1439 = vmatprep.subr.bf16.mxu0 0
        %1440 = vmatpush1.bf16.msra.mxu0 0
        %1441 = vmatprep.subr.bf16.mxu0 0
        %1442 = vmatpush1.bf16.msra.mxu0 0
        %1443 = vmatprep.subr.bf16.mxu0 0
        %1444 = vmatpush1.bf16.msra.mxu0 0
        %1445 = vmatprep.subr.bf16.mxu0 0
        %1446 = vmatpush1.bf16.msra.mxu0 0
        %1447 = vmatprep.subr.bf16.mxu0 0
        %1448 = vmatpush1.bf16.msra.mxu0 0
        %1449 = vmatprep.subr.bf16.mxu0 0
        %1450 = vmatpush1.bf16.msra.mxu0 0
        %1451 = vmatprep.subr.bf16.mxu0 0
        %1452 = vmatpush1.bf16.msra.mxu0 0
        %1453 = vmatprep.subr.bf16.mxu0 0
        %1454 = vmatpush1.bf16.msra.mxu0 0
        %1455 = vmatprep.subr.bf16.mxu0 0
        %1456 = vmatpush1.bf16.msra.mxu0 0
        %1457 = vmatprep.mubr.bf16.mxu0 0
        %1458 = vmatmul.mubr.bf16.gmra.mrb[0].mxu0 %v1420
        %v1459 = vpop.f32.mrb[0].mxu0
        %v1460 = vadd.f32 0.0, %v1459
        %v1461 = vpop.f32.mrb[0].mxu0
        %v1462 = vpop.f32.mrb[0].mxu0
        %v1463 = vpop.f32.mrb[0].mxu0
        %1464 = vdwg.mxu0
        %1465 = vrot.lane.b32.xlu0 %v712, 80
        %v1466 = vpop.permute.xlu0 %1465
        %v1468 = vsel %vm911, %v1414, 0
        %v1471 = vsel %vm966, %v1466, 0
        %1473 = vmatprep.subr.bf16.mxu0 0
        %1474 = vmatpush1.bf16.msra.mxu0 %v1471
        %1475 = vmatprep.subr.bf16.mxu0 0
        %1476 = vmatpush1.bf16.msra.mxu0 0
        %1477 = vmatprep.subr.bf16.mxu0 0
        %1478 = vmatpush1.bf16.msra.mxu0 0
        %1479 = vmatprep.subr.bf16.mxu0 0
        %1480 = vmatpush1.bf16.msra.mxu0 0
        %1481 = vmatprep.subr.bf16.mxu0 0
        %1482 = vmatpush1.bf16.msra.mxu0 0
        %1483 = vmatprep.subr.bf16.mxu0 0
        %1484 = vmatpush1.bf16.msra.mxu0 0
        %1485 = vmatprep.subr.bf16.mxu0 0
        %1486 = vmatpush1.bf16.msra.mxu0 0
        %1487 = vmatprep.subr.bf16.mxu0 0
        %1488 = vmatpush1.bf16.msra.mxu0 0
        %1489 = vmatprep.subr.bf16.mxu0 0
        %1490 = vmatpush1.bf16.msra.mxu0 0
        %1491 = vmatprep.subr.bf16.mxu0 0
        %1492 = vmatpush1.bf16.msra.mxu0 0
        %1493 = vmatprep.subr.bf16.mxu0 0
        %1494 = vmatpush1.bf16.msra.mxu0 0
        %1495 = vmatprep.subr.bf16.mxu0 0
        %1496 = vmatpush1.bf16.msra.mxu0 0
        %1497 = vmatprep.subr.bf16.mxu0 0
        %1498 = vmatpush1.bf16.msra.mxu0 0
        %1499 = vmatprep.subr.bf16.mxu0 0
        %1500 = vmatpush1.bf16.msra.mxu0 0
        %1501 = vmatprep.subr.bf16.mxu0 0
        %1502 = vmatpush1.bf16.msra.mxu0 0
        %1503 = vmatprep.subr.bf16.mxu0 0
        %1504 = vmatpush1.bf16.msra.mxu0 0
        %1505 = vmatprep.mubr.bf16.mxu0 0
        %1506 = vmatmul.mubr.bf16.gmra.mrb[0].mxu0 %v1468
        %v1507 = vpop.f32.mrb[0].mxu0
        %v1508 = vadd.f32 0.0, %v1507
        %v1509 = vpop.f32.mrb[0].mxu0
        %v1510 = vpop.f32.mrb[0].mxu0
        %v1511 = vpop.f32.mrb[0].mxu0
        %1512 = vdwg.mxu0
        %1513 = vrot.lane.b32.xlu0 %v713, 80
        %v1514 = vpop.permute.xlu0 %1513
        %v1516 = vsel %vm911, %v1415, 0
        %v1519 = vsel %vm966, %v1514, 0
        %1521 = vmatprep.subr.bf16.mxu0 0
        %1522 = vmatpush1.bf16.msra.mxu0 %v1519
        %1523 = vmatprep.subr.bf16.mxu0 0
        %1524 = vmatpush1.bf16.msra.mxu0 0
        %1525 = vmatprep.subr.bf16.mxu0 0
        %1526 = vmatpush1.bf16.msra.mxu0 0
        %1527 = vmatprep.subr.bf16.mxu0 0
        %1528 = vmatpush1.bf16.msra.mxu0 0
        %1529 = vmatprep.subr.bf16.mxu0 0
        %1530 = vmatpush1.bf16.msra.mxu0 0
        %1531 = vmatprep.subr.bf16.mxu0 0
        %1532 = vmatpush1.bf16.msra.mxu0 0
        %1533 = vmatprep.subr.bf16.mxu0 0
        %1534 = vmatpush1.bf16.msra.mxu0 0
        %1535 = vmatprep.subr.bf16.mxu0 0
        %1536 = vmatpush1.bf16.msra.mxu0 0
        %1537 = vmatprep.subr.bf16.mxu0 0
        %1538 = vmatpush1.bf16.msra.mxu0 0
        %1539 = vmatprep.subr.bf16.mxu0 0
        %1540 = vmatpush1.bf16.msra.mxu0 0
        %1541 = vmatprep.subr.bf16.mxu0 0
        %1542 = vmatpush1.bf16.msra.mxu0 0
        %1543 = vmatprep.subr.bf16.mxu0 0
        %1544 = vmatpush1.bf16.msra.mxu0 0
        %1545 = vmatprep.subr.bf16.mxu0 0
        %1546 = vmatpush1.bf16.msra.mxu0 0
        %1547 = vmatprep.subr.bf16.mxu0 0
        %1548 = vmatpush1.bf16.msra.mxu0 0
        %1549 = vmatprep.subr.bf16.mxu0 0
        %1550 = vmatpush1.bf16.msra.mxu0 0
        %1551 = vmatprep.subr.bf16.mxu0 0
        %1552 = vmatpush1.bf16.msra.mxu0 0
        %1553 = vmatprep.mubr.bf16.mxu0 0
        %1554 = vmatmul.mubr.bf16.gmra.mrb[0].mxu0 %v1516
        %v1555 = vpop.f32.mrb[0].mxu0
        %v1556 = vadd.f32 0.0, %v1555
        %v1557 = vpop.f32.mrb[0].mxu0
        %v1558 = vpop.f32.mrb[0].mxu0
        %v1559 = vpop.f32.mrb[0].mxu0
        %1560 = vdwg.mxu0
        %1561 = vrot.lane.b32.xlu0 %v714, 80
        %v1562 = vpop.permute.xlu0 %1561
        %v1564 = vsel %vm911, %v1416, 0
        %v1567 = vsel %vm966, %v1562, 0
        %1569 = vmatprep.subr.bf16.mxu0 0
        %1570 = vmatpush1.bf16.msra.mxu0 %v1567
        %1571 = vmatprep.subr.bf16.mxu0 0
        %1572 = vmatpush1.bf16.msra.mxu0 0
        %1573 = vmatprep.subr.bf16.mxu0 0
        %1574 = vmatpush1.bf16.msra.mxu0 0
        %1575 = vmatprep.subr.bf16.mxu0 0
        %1576 = vmatpush1.bf16.msra.mxu0 0
        %1577 = vmatprep.subr.bf16.mxu0 0
        %1578 = vmatpush1.bf16.msra.mxu0 0
        %1579 = vmatprep.subr.bf16.mxu0 0
        %1580 = vmatpush1.bf16.msra.mxu0 0
        %1581 = vmatprep.subr.bf16.mxu0 0
        %1582 = vmatpush1.bf16.msra.mxu0 0
        %1583 = vmatprep.subr.bf16.mxu0 0
        %1584 = vmatpush1.bf16.msra.mxu0 0
        %1585 = vmatprep.subr.bf16.mxu0 0
        %1586 = vmatpush1.bf16.msra.mxu0 0
        %1587 = vmatprep.subr.bf16.mxu0 0
        %1588 = vmatpush1.bf16.msra.mxu0 0
        %1589 = vmatprep.subr.bf16.mxu0 0
        %1590 = vmatpush1.bf16.msra.mxu0 0
        %1591 = vmatprep.subr.bf16.mxu0 0
        %1592 = vmatpush1.bf16.msra.mxu0 0
        %1593 = vmatprep.subr.bf16.mxu0 0
        %1594 = vmatpush1.bf16.msra.mxu0 0
        %1595 = vmatprep.subr.bf16.mxu0 0
        %1596 = vmatpush1.bf16.msra.mxu0 0
        %1597 = vmatprep.subr.bf16.mxu0 0
        %1598 = vmatpush1.bf16.msra.mxu0 0
        %1599 = vmatprep.subr.bf16.mxu0 0
        %1600 = vmatpush1.bf16.msra.mxu0 0
        %1601 = vmatprep.mubr.bf16.mxu0 0
        %1602 = vmatmul.mubr.bf16.gmra.mrb[0].mxu0 %v1564
        %v1603 = vpop.f32.mrb[0].mxu0
        %v1604 = vadd.f32 0.0, %v1603
        %v1605 = vpop.f32.mrb[0].mxu0
        %v1606 = vpop.f32.mrb[0].mxu0
        %v1607 = vpop.f32.mrb[0].mxu0
        %1608 = vdwg.mxu0
        %1613 = vrot.lane.b32.xlu0 %v1460, 16
        %v1614 = vpop.permute.xlu0 %1613
        %1615 = vrot.lane.b32.xlu0 %v1508, 16
        %v1616 = vpop.permute.xlu0 %1615
        %1617 = vrot.lane.b32.xlu0 %v1556, 16
        %v1618 = vpop.permute.xlu0 %1617
        %1619 = vrot.lane.b32.xlu0 %v1604, 16
        %v1620 = vpop.permute.xlu0 %1619
        %v1625 = vsel %vm720, %v1005, %v1614
        %v1626 = vsel %vm720, %v1054, %v1616
        %v1627 = vsel %vm720, %v1103, %v1618
        %v1628 = vsel %vm720, %v1152, %v1620
        %v1629 = vpack.c.bf16 %v1626, %v1625
        %v1630 = vpack.c.bf16 %v1628, %v1627
        %s1631 = smul.addr %s526, 4
        %s1632 = scalar_lea.vmem [#allocation8], %s1631
        %v1633 = vld [vmem:[%s1632] sm:$0xf]
        %v1634 = vld [vmem:[%s1632 + $0x4] sm:$0xf]
        %v1635 = vld [vmem:[%s1632 + $0x8] sm:$0xf]
        %v1636 = vld [vmem:[%s1632 + $0xc] sm:$0xf]
        %v1637 = vlaneseq
        %v1638 = vshrl.u32 %v1637, 7
        %v1639 = vsub.s32 3, %v1638
        %v1640 = vrot.slane %v453, %v1639
        %v1645 = vunpack.c.l.b16 %v1633
        %v1646 = vunpack.c.l.b16 %v1634
        %v1647 = vunpack.c.l.b16 %v1635
        %v1648 = vunpack.c.l.b16 %v1636
        %v1649 = vpack.c.b16 %v1646, %v1645
        %v1650 = vpack.c.b16 %v1648, %v1647
        %v1654 = vsel %vm454, %v1629, 0
        %v1657 = vsel %vm454, %v1630, 0
        %1659 = vmatprep.subr.bf16.mxu0 0
        %1660 = vmatpush1.bf16.msra.mxu0 %v1649
        %1661 = vmatprep.subr.bf16.mxu0 0
        %1662 = vmatpush1.bf16.msra.mxu0 %v1650
        %1663 = vmatprep.subr.bf16.mxu0 0
        %1664 = vmatpush1.bf16.msra.mxu0 0
        %1665 = vmatprep.subr.bf16.mxu0 0
        %1666 = vmatpush1.bf16.msra.mxu0 0
        %1667 = vmatprep.subr.bf16.mxu0 0
        %1668 = vmatpush1.bf16.msra.mxu0 0
        %1669 = vmatprep.subr.bf16.mxu0 0
        %1670 = vmatpush1.bf16.msra.mxu0 0
        %1671 = vmatprep.subr.bf16.mxu0 0
        %1672 = vmatpush1.bf16.msra.mxu0 0
        %1673 = vmatprep.subr.bf16.mxu0 0
        %1674 = vmatpush1.bf16.msra.mxu0 0
        %1675 = vmatprep.subr.bf16.mxu0 0
        %1676 = vmatpush1.bf16.msra.mxu0 0
        %1677 = vmatprep.subr.bf16.mxu0 0
        %1678 = vmatpush1.bf16.msra.mxu0 0
        %1679 = vmatprep.subr.bf16.mxu0 0
        %1680 = vmatpush1.bf16.msra.mxu0 0
        %1681 = vmatprep.subr.bf16.mxu0 0
        %1682 = vmatpush1.bf16.msra.mxu0 0
        %1683 = vmatprep.subr.bf16.mxu0 0
        %1684 = vmatpush1.bf16.msra.mxu0 0
        %1685 = vmatprep.subr.bf16.mxu0 0
        %1686 = vmatpush1.bf16.msra.mxu0 0
        %1687 = vmatprep.subr.bf16.mxu0 0
        %1688 = vmatpush1.bf16.msra.mxu0 0
        %1689 = vmatprep.subr.bf16.mxu0 0
        %1690 = vmatpush1.bf16.msra.mxu0 0
        %1691 = vmatprep.mubr.bf16.mxu0 0
        %1692 = vmatmul.mubr.bf16.gmra.mrb[0].mxu0 %v1654
        %v1693 = vpop.f32.mrb[0].mxu0
        %v1694 = vadd.f32 %v1640, %v1693
        %v1695 = vpop.f32.mrb[0].mxu0
        %v1696 = vpop.f32.mrb[0].mxu0
        %v1697 = vadd.f32 %v1640, %v1696
        %v1698 = vpop.f32.mrb[0].mxu0
        %1699 = vmatprep.mubr.bf16.mxu0 0
        %1700 = vmatmul.mubr.bf16.gmra.mrb[0].mxu0 %v1657
        %v1701 = vpop.f32.mrb[0].mxu0
        %v1702 = vadd.f32 %v1640, %v1701
        %v1703 = vpop.f32.mrb[0].mxu0
        %v1704 = vpop.f32.mrb[0].mxu0
        %v1705 = vadd.f32 %v1640, %v1704
        %v1706 = vpop.f32.mrb[0].mxu0
        %1707 = vdwg.mxu0
        %v1708 = vsel %vm454, %v1694, 0.0
        %1709 = vadd.xlane.f32.xlu0 %v1708
        %v1710 = vpop.xlane.xlu0 %1709
        %v1711 = vsel %vm454, %v1697, 0.0
        %1712 = vadd.xlane.f32.xlu0 %v1711
        %v1713 = vpop.xlane.xlu0 %1712
        %v1714 = vsel %vm454, %v1702, 0.0
        %1715 = vadd.xlane.f32.xlu0 %v1714
        %v1716 = vpop.xlane.xlu0 %1715
        %v1717 = vsel %vm454, %v1705, 0.0
        %1718 = vadd.xlane.f32.xlu0 %v1717
        %v1719 = vpop.xlane.xlu0 %1718
        %v1720 = vmul.f32 %v1710, %v467
        %v1721 = vmul.f32 %v1713, %v467
        %v1722 = vmul.f32 %v1716, %v467
        %v1723 = vmul.f32 %v1719, %v467
        %v1724 = vsub.f32 %v1694, %v1720
        %v1725 = vsub.f32 %v1697, %v1721
        %v1726 = vsub.f32 %v1702, %v1722
        %v1727 = vsub.f32 %v1705, %v1723
        %v1728 = vmul.f32 %v1724, %v1724
        %v1729 = vmul.f32 %v1725, %v1725
        %v1730 = vmul.f32 %v1726, %v1726
        %v1731 = vmul.f32 %v1727, %v1727
        %v1732 = vsel %vm454, %v1728, 0.0
        %1733 = vadd.xlane.f32.xlu0 %v1732
        %v1734 = vpop.xlane.xlu0 %1733
        %v1735 = vsel %vm454, %v1729, 0.0
        %1736 = vadd.xlane.f32.xlu0 %v1735
        %v1737 = vpop.xlane.xlu0 %1736
        %v1738 = vsel %vm454, %v1730, 0.0
        %1739 = vadd.xlane.f32.xlu0 %v1738
        %v1740 = vpop.xlane.xlu0 %1739
        %v1741 = vsel %vm454, %v1731, 0.0
        %1742 = vadd.xlane.f32.xlu0 %v1741
        %v1743 = vpop.xlane.xlu0 %1742
        %v1744 = vmul.f32 %v1734, %v467
        %v1745 = vmul.f32 %v1737, %v467
        %v1746 = vmul.f32 %v1740, %v467
        %v1747 = vmul.f32 %v1743, %v467
        %v1748 = vadd.f32 %v1744, 1e-05
        %v1749 = vadd.f32 %v1745, 1e-05
        %v1750 = vadd.f32 %v1746, 1e-05
        %v1751 = vadd.f32 %v1747, 1e-05
        %v1752 = vrsqrt.pop %v1748
        %v1753 = vrsqrt.pop %v1749
        %v1754 = vrsqrt.pop %v1750
        %v1755 = vrsqrt.pop %v1751
        %v1756 = vmul.f32 %v1724, %v1752
        %v1757 = vmul.f32 %v1725, %v1753
        %v1758 = vmul.f32 %v1726, %v1754
        %v1759 = vmul.f32 %v1727, %v1755
        %v1760 = vmul.f32 %v1756, %v511
        %v1761 = vmul.f32 %v1757, %v511
        %v1762 = vmul.f32 %v1758, %v511
        %v1763 = vmul.f32 %v1759, %v511
        %v1764 = vadd.f32 %v1760, %v519
        %v1765 = vadd.f32 %v1761, %v519
        %v1766 = vadd.f32 %v1762, %v519
        %v1767 = vadd.f32 %v1763, %v519
        %v1768 = vadd.f32 %v447, %v1764
        %v1769 = vadd.f32 %v448, %v1765
        %v1770 = vadd.f32 %v449, %v1766
        %v1771 = vadd.f32 %v450, %v1767
        %v1772 = vpack.c.bf16 %v1769, %v1768
        %v1773 = vpack.c.bf16 %v1771, %v1770
        %s1774 = smul.addr %s526, 4
        %s1775 = scalar_lea.vmem [#allocation9], %s1774
        %v1776 = vld [vmem:[%s1775] sm:$0xf]
        %v1777 = vld [vmem:[%s1775 + $0x4] sm:$0xf]
        %v1778 = vld [vmem:[%s1775 + $0x8] sm:$0xf]
        %v1779 = vld [vmem:[%s1775 + $0xc] sm:$0xf]
        %v1780 = vlaneseq
        %v1781 = vshrl.u32 %v1780, 7
        %v1782 = vsub.s32 4, %v1781
        %v1783 = vrot.slane %v453, %v1782
        %v1788 = vunpack.c.l.b16 %v1776
        %v1789 = vunpack.c.l.b16 %v1777
        %v1790 = vunpack.c.l.b16 %v1778
        %v1791 = vunpack.c.l.b16 %v1779
        %v1792 = vpack.c.b16 %v1789, %v1788
        %v1793 = vpack.c.b16 %v1791, %v1790
        %v1797 = vsel %vm454, %v1772, 0
        %v1800 = vsel %vm454, %v1773, 0
        %1802 = vmatprep.subr.bf16.mxu0 0
        %1803 = vmatpush1.bf16.msra.mxu0 %v1792
        %1804 = vmatprep.subr.bf16.mxu0 0
        %1805 = vmatpush1.bf16.msra.mxu0 %v1793
        %1806 = vmatprep.subr.bf16.mxu0 0
        %1807 = vmatpush1.bf16.msra.mxu0 0
        %1808 = vmatprep.subr.bf16.mxu0 0
        %1809 = vmatpush1.bf16.msra.mxu0 0
        %1810 = vmatprep.subr.bf16.mxu0 0
        %1811 = vmatpush1.bf16.msra.mxu0 0
        %1812 = vmatprep.subr.bf16.mxu0 0
        %1813 = vmatpush1.bf16.msra.mxu0 0
        %1814 = vmatprep.subr.bf16.mxu0 0
        %1815 = vmatpush1.bf16.msra.mxu0 0
        %1816 = vmatprep.subr.bf16.mxu0 0
        %1817 = vmatpush1.bf16.msra.mxu0 0
        %1818 = vmatprep.subr.bf16.mxu0 0
        %1819 = vmatpush1.bf16.msra.mxu0 0
        %1820 = vmatprep.subr.bf16.mxu0 0
        %1821 = vmatpush1.bf16.msra.mxu0 0
        %1822 = vmatprep.subr.bf16.mxu0 0
        %1823 = vmatpush1.bf16.msra.mxu0 0
        %1824 = vmatprep.subr.bf16.mxu0 0
        %1825 = vmatpush1.bf16.msra.mxu0 0
        %1826 = vmatprep.subr.bf16.mxu0 0
        %1827 = vmatpush1.bf16.msra.mxu0 0
        %1828 = vmatprep.subr.bf16.mxu0 0
        %1829 = vmatpush1.bf16.msra.mxu0 0
        %1830 = vmatprep.subr.bf16.mxu0 0
        %1831 = vmatpush1.bf16.msra.mxu0 0
        %1832 = vmatprep.subr.bf16.mxu0 0
        %1833 = vmatpush1.bf16.msra.mxu0 0
        %1834 = vmatprep.mubr.bf16.mxu0 0
        %1835 = vmatmul.mubr.bf16.gmra.mrb[0].mxu0 %v1797
        %v1836 = vpop.f32.mrb[0].mxu0
        %v1837 = vadd.f32 %v1783, %v1836
        %v1838 = vpop.f32.mrb[0].mxu0
        %v1839 = vpop.f32.mrb[0].mxu0
        %v1840 = vadd.f32 %v1783, %v1839
        %v1841 = vpop.f32.mrb[0].mxu0
        %1842 = vmatprep.mubr.bf16.mxu0 0
        %1843 = vmatmul.mubr.bf16.gmra.mrb[0].mxu0 %v1800
        %v1844 = vpop.f32.mrb[0].mxu0
        %v1845 = vadd.f32 %v1783, %v1844
        %v1846 = vpop.f32.mrb[0].mxu0
        %v1847 = vpop.f32.mrb[0].mxu0
        %v1848 = vadd.f32 %v1783, %v1847
        %v1849 = vpop.f32.mrb[0].mxu0
        %1850 = vdwg.mxu0
        %v1851 = vmax.f32 %v1837, 0.0
        %v1852 = vmax.f32 %v1840, 0.0
        %v1853 = vmax.f32 %v1845, 0.0
        %v1854 = vmax.f32 %v1848, 0.0
        %v1855 = vpack.c.bf16 %v1852, %v1851
        %v1856 = vpack.c.bf16 %v1854, %v1853
        %s1857 = smul.addr %s526, 4
        %s1858 = scalar_lea.vmem [#allocation11], %s1857
        %v1859 = vld [vmem:[%s1858] sm:$0xf]
        %v1860 = vld [vmem:[%s1858 + $0x4] sm:$0xf]
        %v1861 = vld [vmem:[%s1858 + $0x8] sm:$0xf]
        %v1862 = vld [vmem:[%s1858 + $0xc] sm:$0xf]
        %v1863 = vlaneseq
        %v1864 = vshrl.u32 %v1863, 7
        %v1865 = vsub.s32 5, %v1864
        %v1866 = vrot.slane %v453, %v1865
        %v1871 = vunpack.c.l.b16 %v1859
        %v1872 = vunpack.c.l.b16 %v1860
        %v1873 = vunpack.c.l.b16 %v1861
        %v1874 = vunpack.c.l.b16 %v1862
        %v1875 = vpack.c.b16 %v1872, %v1871
        %v1876 = vpack.c.b16 %v1874, %v1873
        %v1880 = vsel %vm454, %v1855, 0
        %v1883 = vsel %vm454, %v1856, 0
        %1885 = vmatprep.subr.bf16.mxu0 0
        %1886 = vmatpush1.bf16.msra.mxu0 %v1875
        %1887 = vmatprep.subr.bf16.mxu0 0
        %1888 = vmatpush1.bf16.msra.mxu0 %v1876
        %1889 = vmatprep.subr.bf16.mxu0 0
        %1890 = vmatpush1.bf16.msra.mxu0 0
        %1891 = vmatprep.subr.bf16.mxu0 0
        %1892 = vmatpush1.bf16.msra.mxu0 0
        %1893 = vmatprep.subr.bf16.mxu0 0
        %1894 = vmatpush1.bf16.msra.mxu0 0
        %1895 = vmatprep.subr.bf16.mxu0 0
        %1896 = vmatpush1.bf16.msra.mxu0 0
        %1897 = vmatprep.subr.bf16.mxu0 0
        %1898 = vmatpush1.bf16.msra.mxu0 0
        %1899 = vmatprep.subr.bf16.mxu0 0
        %1900 = vmatpush1.bf16.msra.mxu0 0
        %1901 = vmatprep.subr.bf16.mxu0 0
        %1902 = vmatpush1.bf16.msra.mxu0 0
        %1903 = vmatprep.subr.bf16.mxu0 0
        %1904 = vmatpush1.bf16.msra.mxu0 0
        %1905 = vmatprep.subr.bf16.mxu0 0
        %1906 = vmatpush1.bf16.msra.mxu0 0
        %1907 = vmatprep.subr.bf16.mxu0 0
        %1908 = vmatpush1.bf16.msra.mxu0 0
        %1909 = vmatprep.subr.bf16.mxu0 0
        %1910 = vmatpush1.bf16.msra.mxu0 0
        %1911 = vmatprep.subr.bf16.mxu0 0
        %1912 = vmatpush1.bf16.msra.mxu0 0
        %1913 = vmatprep.subr.bf16.mxu0 0
        %1914 = vmatpush1.bf16.msra.mxu0 0
        %1915 = vmatprep.subr.bf16.mxu0 0
        %1916 = vmatpush1.bf16.msra.mxu0 0
        %1917 = vmatprep.mubr.bf16.mxu0 0
        %1918 = vmatmul.mubr.bf16.gmra.mrb[0].mxu0 %v1880
        %v1919 = vpop.f32.mrb[0].mxu0
        %v1920 = vadd.f32 %v1866, %v1919
        %v1921 = vpop.f32.mrb[0].mxu0
        %v1922 = vpop.f32.mrb[0].mxu0
        %v1923 = vadd.f32 %v1866, %v1922
        %v1924 = vpop.f32.mrb[0].mxu0
        %1925 = vmatprep.mubr.bf16.mxu0 0
        %1926 = vmatmul.mubr.bf16.gmra.mrb[0].mxu0 %v1883
        %v1927 = vpop.f32.mrb[0].mxu0
        %v1928 = vadd.f32 %v1866, %v1927
        %v1929 = vpop.f32.mrb[0].mxu0
        %v1930 = vpop.f32.mrb[0].mxu0
        %v1931 = vadd.f32 %v1866, %v1930
        %v1932 = vpop.f32.mrb[0].mxu0
        %1933 = vdwg.mxu0
        %v1934 = vsel %vm454, %v1920, 0.0
        %1935 = vadd.xlane.f32.xlu0 %v1934
        %v1936 = vpop.xlane.xlu0 %1935
        %v1937 = vsel %vm454, %v1923, 0.0
        %1938 = vadd.xlane.f32.xlu0 %v1937
        %v1939 = vpop.xlane.xlu0 %1938
        %v1940 = vsel %vm454, %v1928, 0.0
        %1941 = vadd.xlane.f32.xlu0 %v1940
        %v1942 = vpop.xlane.xlu0 %1941
        %v1943 = vsel %vm454, %v1931, 0.0
        %1944 = vadd.xlane.f32.xlu0 %v1943
        %v1945 = vpop.xlane.xlu0 %1944
        %v1946 = vmul.f32 %v1936, %v467
        %v1947 = vmul.f32 %v1939, %v467
        %v1948 = vmul.f32 %v1942, %v467
        %v1949 = vmul.f32 %v1945, %v467
        %v1950 = vsub.f32 %v1920, %v1946
        %v1951 = vsub.f32 %v1923, %v1947
        %v1952 = vsub.f32 %v1928, %v1948
        %v1953 = vsub.f32 %v1931, %v1949
        %v1954 = vmul.f32 %v1950, %v1950
        %v1955 = vmul.f32 %v1951, %v1951
        %v1956 = vmul.f32 %v1952, %v1952
        %v1957 = vmul.f32 %v1953, %v1953
        %v1958 = vsel %vm454, %v1954, 0.0
        %1959 = vadd.xlane.f32.xlu0 %v1958
        %v1960 = vpop.xlane.xlu0 %1959
        %v1961 = vsel %vm454, %v1955, 0.0
        %1962 = vadd.xlane.f32.xlu0 %v1961
        %v1963 = vpop.xlane.xlu0 %1962
        %v1964 = vsel %vm454, %v1956, 0.0
        %1965 = vadd.xlane.f32.xlu0 %v1964
        %v1966 = vpop.xlane.xlu0 %1965
        %v1967 = vsel %vm454, %v1957, 0.0
        %1968 = vadd.xlane.f32.xlu0 %v1967
        %v1969 = vpop.xlane.xlu0 %1968
        %v1970 = vmul.f32 %v1960, %v467
        %v1971 = vmul.f32 %v1963, %v467
        %v1972 = vmul.f32 %v1966, %v467
        %v1973 = vmul.f32 %v1969, %v467
        %v1974 = vadd.f32 %v1970, 1e-05
        %v1975 = vadd.f32 %v1971, 1e-05
        %v1976 = vadd.f32 %v1972, 1e-05
        %v1977 = vadd.f32 %v1973, 1e-05
        %v1978 = vrsqrt.pop %v1974
        %v1979 = vrsqrt.pop %v1975
        %v1980 = vrsqrt.pop %v1976
        %v1981 = vrsqrt.pop %v1977
        %v1982 = vmul.f32 %v1950, %v1978
        %v1983 = vmul.f32 %v1951, %v1979
        %v1984 = vmul.f32 %v1952, %v1980
        %v1985 = vmul.f32 %v1953, %v1981
        %v1986 = vmul.f32 %v1982, %v511
        %v1987 = vmul.f32 %v1983, %v511
        %v1988 = vmul.f32 %v1984, %v511
        %v1989 = vmul.f32 %v1985, %v511
        %v1990 = vadd.f32 %v1986, %v519
        %v1991 = vadd.f32 %v1987, %v519
        %v1992 = vadd.f32 %v1988, %v519
        %v1993 = vadd.f32 %v1989, %v519
        %v1994 = vadd.f32 %v1768, %v1990
        %v1995 = vadd.f32 %v1769, %v1991
        %v1996 = vadd.f32 %v1770, %v1992
        %v1997 = vadd.f32 %v1771, %v1993
        %v1998 = vld [vmem:[%s431] sm:$0xff]
        %v1999 = vld [vmem:[%s431 + $0x8] sm:$0xff]
        %v2000 = vld [vmem:[%s431 + $0x10] sm:$0xff]
        %v2001 = vld [vmem:[%s431 + $0x18] sm:$0xff]
        %2003 = vset.pattern.permute.xlu0 0
        %2004 = vperm.xlu0 %2003, %v1998
        %v2005 = vpop.permute.xlu0 %2004
        %2008 = vset.pattern.permute.xlu0 0
        %2009 = vperm.xlu0 %2008, %v1999
        %v2010 = vpop.permute.xlu0 %2009
        %2013 = vset.pattern.permute.xlu0 0
        %2014 = vperm.xlu0 %2013, %v2000
        %v2015 = vpop.permute.xlu0 %2014
        %2018 = vset.pattern.permute.xlu0 0
        %2019 = vperm.xlu0 %2018, %v2001
        %v2020 = vpop.permute.xlu0 %2019
        %v2022 = vmul.f32 %v1994, %v2005
        %v2023 = vmul.f32 %v1995, %v2010
        %v2024 = vmul.f32 %v1996, %v2015
        %v2025 = vmul.f32 %v1997, %v2020
        %2026 = vst.msk [vmem:[#allocation2] sm:$0xff] %vm454, %v2022
        %2027 = vst.msk [vmem:[#allocation2 + $0x8] sm:$0xff] %vm454, %v2023
        %2028 = vst.msk [vmem:[#allocation2 + $0x10] sm:$0xff] %vm454, %v2024
        %2029 = vst.msk [vmem:[#allocation2 + $0x18] sm:$0xff] %vm454, %v2025
        %p2030 = scmp.eq.s32.totalorder %s29, 1
        // Predicated region
        $region81: #{tpu_custom_call.1} parent=55 // pred_check
          %p2031 = pneg %p2030
        $region82: #{tpu_custom_call.1} parent=55 // pred_check_branch
          %2033 = sbr.rel (%p2031) target = $region84
        $region83: #{tpu_custom_call.1} parent=55 // pred_region
          %v2034 = vld [vmem:[%s8] sm:$0x1]
          %v2035 = vld [vmem:[%s8 + $0x1] sm:$0x1]
          %v2040 = vrot.slane %v2023, 7
          %v2041 = vrot.slane %v2024, 6
          %vm2042 = vcmask 1041409
          %v2043 = vsel %vm2042, %v2041, %v2040
          %v2044 = vrot.slane %v2025, 5
          %vm2045 = vcmask 1042434
          %v2046 = vsel %vm2045, %v2044, %v2043
          %vm2049 = vcmask 261127
          %v2050 = vsel %vm2049, %v2022, 0.0
          %2051 = vadd.xlane.f32.xlu0 %v2050
          %v2052 = vpop.xlane.xlu0 %2051
          %vm2053 = vcmask 256000
          %v2054 = vsel %vm2053, %v2046, 0.0
          %2055 = vadd.xlane.f32.xlu0 %v2054
          %v2056 = vpop.xlane.xlu0 %2055
          %v2057 = vmul.f32 %v2052, %v467
          %v2058 = vmul.f32 %v2056, %v467
          %v2061 = vrot.slane %v2058, 1
          %v2062 = vrot.slane %v2058, 2
          %v2063 = vrot.slane %v2058, 3
          %v2068 = vsub.f32 %v2022, %v2057
          %v2069 = vsub.f32 %v2023, %v2061
          %v2070 = vsub.f32 %v2024, %v2062
          %v2071 = vsub.f32 %v2025, %v2063
          %v2072 = vmul.f32 %v2068, %v2068
          %v2073 = vmul.f32 %v2069, %v2069
          %v2074 = vmul.f32 %v2070, %v2070
          %v2075 = vmul.f32 %v2071, %v2071
          %v2080 = vrot.slane %v2073, 7
          %v2081 = vrot.slane %v2074, 6
          %v2082 = vsel %vm2042, %v2081, %v2080
          %v2083 = vrot.slane %v2075, 5
          %v2084 = vsel %vm2045, %v2083, %v2082
          %v2087 = vsel %vm2049, %v2072, 0.0
          %2088 = vadd.xlane.f32.xlu0 %v2087
          %v2089 = vpop.xlane.xlu0 %2088
          %v2090 = vsel %vm2053, %v2084, 0.0
          %2091 = vadd.xlane.f32.xlu0 %v2090
          %v2092 = vpop.xlane.xlu0 %2091
          %v2093 = vmul.f32 %v2089, %v467
          %v2094 = vmul.f32 %v2092, %v467
          %v2095 = vadd.f32 %v2093, 1e-05
          %v2096 = vadd.f32 %v2094, 1e-05
          %v2097 = vrsqrt.pop %v2095
          %v2098 = vrsqrt.pop %v2096
          %v2101 = vrot.slane %v2098, 1
          %v2102 = vrot.slane %v2098, 2
          %v2103 = vrot.slane %v2098, 3
          %v2108 = vmul.f32 %v2068, %v2097
          %v2109 = vmul.f32 %v2069, %v2101
          %v2110 = vmul.f32 %v2070, %v2102
          %v2111 = vmul.f32 %v2071, %v2103
          %v2112 = vlaneseq
          %v2113 = vshrl.u32 %v2112, 7
          %v2114 = vsub.s32 0, %v2113
          %v2115 = vrot.slane %v2034, %v2114
          %v2116 = vmul.f32 %v2108, %v2115
          %v2117 = vmul.f32 %v2109, %v2115
          %v2118 = vmul.f32 %v2110, %v2115
          %v2119 = vmul.f32 %v2111, %v2115
          %v2120 = vlaneseq
          %v2121 = vshrl.u32 %v2120, 7
          %v2122 = vsub.s32 0, %v2121
          %v2123 = vrot.slane %v2035, %v2122
          %v2124 = vadd.f32 %v2116, %v2123
          %v2125 = vadd.f32 %v2117, %v2123
          %v2126 = vadd.f32 %v2118, %v2123
          %v2127 = vadd.f32 %v2119, %v2123
          %v2132 = vrot.slane %v2125, 7
          %v2133 = vrot.slane %v2126, 6
          %v2134 = vsel %vm2042, %v2133, %v2132
          %v2135 = vrot.slane %v2127, 5
          %v2136 = vsel %vm2045, %v2135, %v2134
          %2139 = vst.msk [vmem:[#allocation12 - $0x7] sm:$0x80] %vm2049, %v2124
          %2140 = vst.msk [vmem:[#allocation12 + $0x1] sm:$0x7] %vm2053, %v2136
        $region84: #{tpu_custom_call.1} parent=55 // pred_fallthru
          _
        // Predicated region
        $region85: #{tpu_custom_call.1} parent=55 // pred_check
          %p2141 = pneg %p253
        $region86: #{tpu_custom_call.1} parent=55 // pred_check_branch
          %2143 = sbr.rel (%p2141) target = $region88
        $region87: #{tpu_custom_call.1} parent=55 // pred_region
          %s2145 = ssub.s32 64, 64
          %2146 = vsyncadd [#allocation5], %s2145
          %s2147 = smul.addr %s28, 64
          %s2148 = scalar_lea.hbm %s9, %s2147
          %s2150 = sshll.u32 [#allocation12], 4
          %s2151 = int_to_ptr.vmem [resolvable:$true] %s2150
          %2153 = dma.vmem_to_hbm [thread:$0]  %s2151, 64, %s2148, [#allocation5]
        $region88: #{tpu_custom_call.1} parent=55 // pred_fallthru
          _
        // Predicated region
        $region89: #{tpu_custom_call.1} parent=55 // pred_check
          %p2154 = pneg %p253
        $region90: #{tpu_custom_call.1} parent=55 // pred_check_branch
          %2156 = sbr.rel (%p2154) target = $region92
        $region91: #{tpu_custom_call.1} parent=55 // pred_region
          %2157 = dma.done [#allocation5], 64
        $region92: #{tpu_custom_call.1} parent=55 // pred_fallthru
          _
      $region56: #{tpu_custom_call.1} parent=5 // pred_fallthru
        _
      %p2158 = scmp.le.s32.totalorder 2, %s19
      // Predicated region
      $region93: #{tpu_custom_call.1} parent=5 // pred_check
        %p2159 = pneg %p2158
      $region94: #{tpu_custom_call.1} parent=5 // pred_check_branch
        %2161 = sbr.rel (%p2159) target = $region96
      $region95: #{tpu_custom_call.1} parent=5 // pred_region
        %s2162 = ssub.s32 %s19, 2
      $region96: #{tpu_custom_call.1} parent=5 // pred_fallthru
        _
    $region6: #{tpu_custom_call.1} parent=1 // loop_footer
      %s23 = sadd.s32 1, %s19
    $region7: #{tpu_custom_call.1} parent=1 // loop_footer_branch
      %18 = sbr.rel target = $region3
    $region8: #{tpu_custom_call.1} parent=1 // loop_exit
      _
    %2163 = vsyncpa [#allocation4], 1
    %s2164 = scalar_lea.sflag [#allocation4], 1
    %2165 = vsyncpa %s2164, 1
    %2166 = vsyncpa [#allocation7], 1
    %2167 = vsyncpa [#allocation10], 1
    %2168 = vsyncpa [#allocation5], 1
    %s2169 = scalar_lea.sflag [#allocation5], 1
    %2170 = vsyncpa %s2169, 1

</llo_original>
